<compile_context>
chip_gen: v6e
topology: v6e:2x2x1
jax: 0.10.0
libtpu: 0.0.40
codegen_flags: <defaults>
</compile_context>

<pallas_src>
import functools

import jax
import jax.numpy as jnp
import numpy as np
from jax import lax
from jax.experimental import pallas as pl
from jax.experimental.pallas import tpu as pltpu


def _round_up(v, m):
    return ((v + m - 1) // m) * m


def _fused_vmem_bytes(C, H, W, pad_h, pad_w, itemsize):
    """Rough VMEM footprint of one grid step (double-buffered in/out + scratch)."""
    w_lanes = _round_up(W, 128)
    h_sub = _round_up(H, 8)
    block = C * h_sub * w_lanes * itemsize
    hp_sub = _round_up(H + 2 * pad_h, 8)
    wp_lanes = _round_up(W + 2 * pad_w, 128)
    scratch = 2 * hp_sub * wp_lanes * 4
    return 4 * block + scratch           # (in + out) * double-buffer + scratch


def _make_fused_spatial_gate_kernel(C, KH, KW, H, W, pad_h, pad_w, Wp_lane):
    """x -> x * sigmoid(BN(conv7x7(channel_pool(x)))) for one image."""
    inv_c = np.float32(1.0 / C)

    def kernel(x_ref, w_ref, b_ref, o_ref, pad_ref):
        # x_ref:   (C, H, W)              activations, W on the 128-lane axis.
        # w_ref:   (2*KH*KW,)   SMEM      BN-scale-folded conv weights.
        # b_ref:   (1,)         SMEM      folded BN bias.
        # o_ref:   (C, H, W)              x * gate.
        # pad_ref: (2, H+2*pad_h, Wp_lane) VMEM zero-halo pooled planes.

        # ---- ChannelPool: read x from VMEM once, vectorized over C. ----
        x = x_ref[...].astype(jnp.float32)           # (C, H, W)
        mx = jnp.max(x, axis=0)                      # (H, W) channel max
        mn = jnp.sum(x, axis=0) * inv_c              # (H, W) channel mean

        # ---- Zero halo + write pooled planes into the interior. ----
        # (Zeroed every step: with a "parallel" grid each core owns its own
        #  scratch, so a one-time init would be unsafe on multi-core chips.)
        pad_ref[...] = jnp.zeros_like(pad_ref)
        pad_ref[0, pl.ds(pad_h, H), pl.ds(pad_w, W)] = mx
        pad_ref[1, pl.ds(pad_h, H), pl.ds(pad_w, W)] = mn

        # ---- 7x7, 2->1 conv as 98 scalar-weight FMAs (pure VPU work). ----
        # One (H, Wp_lane) slab load per (ci, kh); kw shifts are static lane
        # rotations (XLU slot); a single crop at the end replaces the 98
        # per-tap lane slices of the previous version.
        acc = jnp.zeros((H, Wp_lane), jnp.float32)
        for ci in range(2):
            for kh in range(KH):
                rows = pad_ref[ci, pl.ds(kh, H), :]          # (H, Wp_lane)
                for kw in range(KW):
                    wgt = w_ref[ci * KH * KW + kh * KW + kw]
                    if kw == 0:
                        tap = rows
                    else:
                        tap = pltpu.roll(rows, shift=Wp_lane - kw, axis=1)
                    acc = acc + wgt * tap

        conv = acc[:, :W] + b_ref[0]                 # single lane crop + bias

        # ---- Sigmoid on the EUP (exp + reciprocal), then gate x. ----
        gate = pl.reciprocal(1.0 + jnp.exp(-conv), approx=False)

        # Single vectorized gating store (no per-channel loop).
        o_ref[...] = (x * gate[None, :, :]).astype(o_ref.dtype)

    return kernel


def spatial_gate_forward(x, conv_w, bn_gamma, bn_beta, bn_mean, bn_var,
                         eps=1e-5):
    """SpatialGate.forward (eval mode). x: (N, C, H, W); conv_w: (1, 2, KH, KW)."""
    N, C, H, W = x.shape
    C_out, C_pool, KH, KW = conv_w.shape
    assert C_out == 1 and C_pool == 2, "SpatialGate spatial conv is 2 -> 1"
    pad_h = (KH - 1) // 2
    pad_w = (KW - 1) // 2

    # Fold eval-mode BN: scale into the conv weights, keep only the bias.
    s = bn_gamma.astype(jnp.float32) / jnp.sqrt(bn_var.astype(jnp.float32) + eps)
    w_flat = (conv_w.astype(jnp.float32) * s[:, None, None, None]).reshape(-1)
    bias = (bn_beta.astype(jnp.float32)
            - bn_mean.astype(jnp.float32) * s).reshape(-1)

    itemsize = jnp.dtype(x.dtype).itemsize
    est = _fused_vmem_bytes(C, H, W, pad_h, pad_w, itemsize)
    budget = 40 * 1024 * 1024        # conservative: fits v7x's 64 MiB/TC too
    if est > budget:
        # TODO(synk): H-tiled halo path for very large per-image blocks.
        raise NotImplementedError(
            "per-image block too large for the fused SpatialGate kernel")
    vmem_limit = int(min(48 * 1024 * 1024, max(2 * est, 16 * 1024 * 1024)))

    Hp = H + 2 * pad_h
    Wp_lane = _round_up(W + 2 * pad_w, 128)
    kernel = _make_fused_spatial_gate_kernel(C, KH, KW, H, W, pad_h, pad_w,
                                             Wp_lane)

    out = pl.pallas_call(
        kernel,
        out_shape=jax.ShapeDtypeStruct((N, C, H, W), x.dtype),
        grid=(N,),
        in_specs=[
            pl.BlockSpec((None, C, H, W), lambda n: (n, 0, 0, 0)),
            pl.BlockSpec(memory_space=pltpu.MemorySpace.SMEM),   # conv weights
            pl.BlockSpec(memory_space=pltpu.MemorySpace.SMEM),   # folded BN bias
        ],
        out_specs=pl.BlockSpec((None, C, H, W), lambda n: (n, 0, 0, 0)),
        scratch_shapes=[pltpu.VMEM((2, Hp, Wp_lane), jnp.float32)],
        compiler_params=pltpu.CompilerParams(
            dimension_semantics=("parallel",),
            vmem_limit_bytes=vmem_limit),
    )(x, w_flat, bias)
    return out


def _reference(x, conv_w, bn_gamma, bn_beta, bn_mean, bn_var, eps):
    mx = jnp.max(x, axis=1, keepdims=True)
    mn = jnp.mean(x, axis=1, keepdims=True)
    xc = jnp.concatenate([mx, mn], axis=1)
    pad_h = (conv_w.shape[2] - 1) // 2
    pad_w = (conv_w.shape[3] - 1) // 2
    y = lax.conv_general_dilated(
        xc, conv_w, window_strides=(1, 1),
        padding=((pad_h, pad_h), (pad_w, pad_w)),
        dimension_numbers=("NCHW", "OIHW", "NCHW"),
        precision=lax.Precision.HIGHEST)
    s = bn_gamma / jnp.sqrt(bn_var + eps)
    b = bn_beta - bn_mean * s
    y = y * s[None, :, None, None] + b[None, :, None, None]
    return x * jax.nn.sigmoid(y)


if __name__ == "__main__":
    # SpatialGate on a small activation: N=2, C=4, H=W=16; 7x7 conv, pad 3.
    N, C, H, W = 2, 4, 16, 16
    K = 7
    eps = 1e-5

    key = jax.random.PRNGKey(0)
    k_x, k_w, k_g, k_b, k_m, k_v = jax.random.split(key, 6)
    x = jax.random.normal(k_x, (N, C, H, W), dtype=jnp.float32)
    conv_w = jax.random.normal(k_w, (1, 2, K, K), dtype=jnp.float32) * 0.1
    gamma = 1.0 + 0.1 * jax.random.normal(k_g, (1,), dtype=jnp.float32)
    beta = 0.1 * jax.random.normal(k_b, (1,), dtype=jnp.float32)
    r_mean = 0.1 * jax.random.normal(k_m, (1,), dtype=jnp.float32)
    r_var = jnp.abs(1.0 + 0.1 * jax.random.normal(k_v, (1,), dtype=jnp.float32))

    fwd = jax.jit(functools.partial(spatial_gate_forward, eps=eps))
    out = jax.block_until_ready(fwd(x, conv_w, gamma, beta, r_mean, r_var))

    ref = jax.block_until_ready(
        _reference(x, conv_w, gamma, beta, r_mean, r_var, eps))

    assert out.shape == (N, C, H, W), out.shape
    np.testing.assert_allclose(np.asarray(out), np.asarray(ref),
                               rtol=1e-4, atol=1e-4)
    print("KERNEL_OK")
</pallas_src>

<mosaic_0001>
module attributes {stable_mosaic.version = 11 : i64} {
  func.func @kernel(%arg0: i32, %arg1: memref<1x4x16x16xf32, #tpu.memory_space<vmem>>, %arg2: memref<98xf32, #tpu.memory_space<smem>>, %arg3: memref<1xf32, #tpu.memory_space<smem>>, %arg4: memref<1x4x16x16xf32, #tpu.memory_space<vmem>>, %arg5: memref<2x22x128xf32, #tpu.memory_space<vmem>>) attributes {dimension_semantics = [#tpu.dimension_semantics<parallel>], iteration_bounds = array<i64: 2>, scalar_prefetch = 0 : i64, scratch_operands = 1 : i64, tpu.core_type = #tpu.core_type<tc>, window_params = [{transform_indices = @transform_0, window_bounds = array<i64: 1, 4, 16, 16>}, {transform_indices = @transform_1, window_bounds = array<i64: 98>}, {transform_indices = @transform_2, window_bounds = array<i64: 1>}, {transform_indices = @transform_3, window_bounds = array<i64: 1, 4, 16, 16>}]} {
    %c0 = arith.constant 0 : index
    %c0_0 = arith.constant 0 : index
    %c0_1 = arith.constant 0 : index
    %c0_2 = arith.constant 0 : index
    %0 = vector.load %arg1[%c0, %c0_0, %c0_1, %c0_2] : memref<1x4x16x16xf32, #tpu.memory_space<vmem>>, vector<1x4x16x16xf32>
    %1 = vector.shape_cast %0 : vector<1x4x16x16xf32> to vector<4x16x16xf32>
    %cst = arith.constant dense<0xFF800000> : vector<16x16xf32>
    %2 = vector.multi_reduction <maximumf>, %1, %cst [0] : vector<4x16x16xf32> to vector<16x16xf32>
    %cst_3 = arith.constant dense<0.000000e+00> : vector<16x16xf32>
    %3 = vector.multi_reduction <add>, %1, %cst_3 [0] : vector<4x16x16xf32> to vector<16x16xf32>
    %cst_4 = arith.constant 2.500000e-01 : f32
    %4 = vector.broadcast %cst_4 : f32 to vector<16x16xf32>
    %5 = arith.mulf %3, %4 : vector<16x16xf32>
    %cst_5 = arith.constant 0.000000e+00 : f32
    %6 = vector.broadcast %cst_5 : f32 to vector<2x22x128xf32>
    %c0_6 = arith.constant 0 : index
    %c0_7 = arith.constant 0 : index
    %c0_8 = arith.constant 0 : index
    %7 = vector.load %arg5[%c0_6, %c0_7, %c0_8] : memref<2x22x128xf32, #tpu.memory_space<vmem>>, vector<2x22x128xf32>
    tpu.vector_store %arg5[%c0_6, %c0_7, %c0_8], %6 {strides = array<i32>} : memref<2x22x128xf32, #tpu.memory_space<vmem>>, vector<2x22x128xf32>,
    %c0_9 = arith.constant 0 : index
    %c3 = arith.constant 3 : index
    %c3_10 = arith.constant 3 : index
    %8 = vector.load %arg5[%c0_9, %c3, %c3_10] : memref<2x22x128xf32, #tpu.memory_space<vmem>>, vector<1x16x16xf32>
    %9 = vector.shape_cast %8 : vector<1x16x16xf32> to vector<16x16xf32>
    %10 = vector.shape_cast %2 : vector<16x16xf32> to vector<1x16x16xf32>
    tpu.vector_store %arg5[%c0_9, %c3, %c3_10], %10 {strides = array<i32>} : memref<2x22x128xf32, #tpu.memory_space<vmem>>, vector<1x16x16xf32>,
    %c1 = arith.constant 1 : index
    %c3_11 = arith.constant 3 : index
    %c3_12 = arith.constant 3 : index
    %11 = vector.load %arg5[%c1, %c3_11, %c3_12] : memref<2x22x128xf32, #tpu.memory_space<vmem>>, vector<1x16x16xf32>
    %12 = vector.shape_cast %11 : vector<1x16x16xf32> to vector<16x16xf32>
    %13 = vector.shape_cast %5 : vector<16x16xf32> to vector<1x16x16xf32>
    tpu.vector_store %arg5[%c1, %c3_11, %c3_12], %13 {strides = array<i32>} : memref<2x22x128xf32, #tpu.memory_space<vmem>>, vector<1x16x16xf32>,
    %cst_13 = arith.constant 0.000000e+00 : f32
    %14 = vector.broadcast %cst_13 : f32 to vector<16x128xf32>
    %c0_14 = arith.constant 0 : index
    %c0_15 = arith.constant 0 : index
    %c0_16 = arith.constant 0 : index
    %15 = vector.load %arg5[%c0_14, %c0_15, %c0_16] : memref<2x22x128xf32, #tpu.memory_space<vmem>>, vector<1x16x128xf32>
    %16 = vector.shape_cast %15 : vector<1x16x128xf32> to vector<16x128xf32>
    %c0_17 = arith.constant 0 : index
    %17 = memref.load %arg2[%c0_17] : memref<98xf32, #tpu.memory_space<smem>>
    %18 = vector.broadcast %17 : f32 to vector<16x128xf32>
    %19 = arith.mulf %18, %16 : vector<16x128xf32>
    %20 = arith.addf %14, %19 : vector<16x128xf32>
    %c1_18 = arith.constant 1 : index
    %21 = memref.load %arg2[%c1_18] : memref<98xf32, #tpu.memory_space<smem>>
    %c127_i32 = arith.constant 127 : i32
    %22 = tpu.dynamic_rotate %16 by %c127_i32 dim 1 : vector<16x128xf32>, i32 -> vector<16x128xf32>
    %23 = vector.broadcast %21 : f32 to vector<16x128xf32>
    %24 = arith.mulf %23, %22 : vector<16x128xf32>
    %25 = arith.addf %20, %24 : vector<16x128xf32>
    %c2 = arith.constant 2 : index
    %26 = memref.load %arg2[%c2] : memref<98xf32, #tpu.memory_space<smem>>
    %c126_i32 = arith.constant 126 : i32
    %27 = tpu.dynamic_rotate %16 by %c126_i32 dim 1 : vector<16x128xf32>, i32 -> vector<16x128xf32>
    %28 = vector.broadcast %26 : f32 to vector<16x128xf32>
    %29 = arith.mulf %28, %27 : vector<16x128xf32>
    %30 = arith.addf %25, %29 : vector<16x128xf32>
    %c3_19 = arith.constant 3 : index
    %31 = memref.load %arg2[%c3_19] : memref<98xf32, #tpu.memory_space<smem>>
    %c125_i32 = arith.constant 125 : i32
    %32 = tpu.dynamic_rotate %16 by %c125_i32 dim 1 : vector<16x128xf32>, i32 -> vector<16x128xf32>
    %33 = vector.broadcast %31 : f32 to vector<16x128xf32>
    %34 = arith.mulf %33, %32 : vector<16x128xf32>
    %35 = arith.addf %30, %34 : vector<16x128xf32>
    %c4 = arith.constant 4 : index
    %36 = memref.load %arg2[%c4] : memref<98xf32, #tpu.memory_space<smem>>
    %c124_i32 = arith.constant 124 : i32
    %37 = tpu.dynamic_rotate %16 by %c124_i32 dim 1 : vector<16x128xf32>, i32 -> vector<16x128xf32>
    %38 = vector.broadcast %36 : f32 to vector<16x128xf32>
    %39 = arith.mulf %38, %37 : vector<16x128xf32>
    %40 = arith.addf %35, %39 : vector<16x128xf32>
    %c5 = arith.constant 5 : index
    %41 = memref.load %arg2[%c5] : memref<98xf32, #tpu.memory_space<smem>>
    %c123_i32 = arith.constant 123 : i32
    %42 = tpu.dynamic_rotate %16 by %c123_i32 dim 1 : vector<16x128xf32>, i32 -> vector<16x128xf32>
    %43 = vector.broadcast %41 : f32 to vector<16x128xf32>
    %44 = arith.mulf %43, %42 : vector<16x128xf32>
    %45 = arith.addf %40, %44 : vector<16x128xf32>
    %c6 = arith.constant 6 : index
    %46 = memref.load %arg2[%c6] : memref<98xf32, #tpu.memory_space<smem>>
    %c122_i32 = arith.constant 122 : i32
    %47 = tpu.dynamic_rotate %16 by %c122_i32 dim 1 : vector<16x128xf32>, i32 -> vector<16x128xf32>
    %48 = vector.broadcast %46 : f32 to vector<16x128xf32>
    %49 = arith.mulf %48, %47 : vector<16x128xf32>
    %50 = arith.addf %45, %49 : vector<16x128xf32>
    %c0_20 = arith.constant 0 : index
    %c1_21 = arith.constant 1 : index
    %c0_22 = arith.constant 0 : index
    %51 = vector.load %arg5[%c0_20, %c1_21, %c0_22] : memref<2x22x128xf32, #tpu.memory_space<vmem>>, vector<1x16x128xf32>
    %52 = vector.shape_cast %51 : vector<1x16x128xf32> to vector<16x128xf32>
    %c7 = arith.constant 7 : index
    %53 = memref.load %arg2[%c7] : memref<98xf32, #tpu.memory_space<smem>>
    %54 = vector.broadcast %53 : f32 to vector<16x128xf32>
    %55 = arith.mulf %54, %52 : vector<16x128xf32>
    %56 = arith.addf %50, %55 : vector<16x128xf32>
    %c8 = arith.constant 8 : index
    %57 = memref.load %arg2[%c8] : memref<98xf32, #tpu.memory_space<smem>>
    %c127_i32_23 = arith.constant 127 : i32
    %58 = tpu.dynamic_rotate %52 by %c127_i32_23 dim 1 : vector<16x128xf32>, i32 -> vector<16x128xf32>
    %59 = vector.broadcast %57 : f32 to vector<16x128xf32>
    %60 = arith.mulf %59, %58 : vector<16x128xf32>
    %61 = arith.addf %56, %60 : vector<16x128xf32>
    %c9 = arith.constant 9 : index
    %62 = memref.load %arg2[%c9] : memref<98xf32, #tpu.memory_space<smem>>
    %c126_i32_24 = arith.constant 126 : i32
    %63 = tpu.dynamic_rotate %52 by %c126_i32_24 dim 1 : vector<16x128xf32>, i32 -> vector<16x128xf32>
    %64 = vector.broadcast %62 : f32 to vector<16x128xf32>
    %65 = arith.mulf %64, %63 : vector<16x128xf32>
    %66 = arith.addf %61, %65 : vector<16x128xf32>
    %c10 = arith.constant 10 : index
    %67 = memref.load %arg2[%c10] : memref<98xf32, #tpu.memory_space<smem>>
    %c125_i32_25 = arith.constant 125 : i32
    %68 = tpu.dynamic_rotate %52 by %c125_i32_25 dim 1 : vector<16x128xf32>, i32 -> vector<16x128xf32>
    %69 = vector.broadcast %67 : f32 to vector<16x128xf32>
    %70 = arith.mulf %69, %68 : vector<16x128xf32>
    %71 = arith.addf %66, %70 : vector<16x128xf32>
    %c11 = arith.constant 11 : index
    %72 = memref.load %arg2[%c11] : memref<98xf32, #tpu.memory_space<smem>>
    %c124_i32_26 = arith.constant 124 : i32
    %73 = tpu.dynamic_rotate %52 by %c124_i32_26 dim 1 : vector<16x128xf32>, i32 -> vector<16x128xf32>
    %74 = vector.broadcast %72 : f32 to vector<16x128xf32>
    %75 = arith.mulf %74, %73 : vector<16x128xf32>
    %76 = arith.addf %71, %75 : vector<16x128xf32>
    %c12 = arith.constant 12 : index
    %77 = memref.load %arg2[%c12] : memref<98xf32, #tpu.memory_space<smem>>
    %c123_i32_27 = arith.constant 123 : i32
    %78 = tpu.dynamic_rotate %52 by %c123_i32_27 dim 1 : vector<16x128xf32>, i32 -> vector<16x128xf32>
    %79 = vector.broadcast %77 : f32 to vector<16x128xf32>
    %80 = arith.mulf %79, %78 : vector<16x128xf32>
    %81 = arith.addf %76, %80 : vector<16x128xf32>
    %c13 = arith.constant 13 : index
    %82 = memref.load %arg2[%c13] : memref<98xf32, #tpu.memory_space<smem>>
    %c122_i32_28 = arith.constant 122 : i32
    %83 = tpu.dynamic_rotate %52 by %c122_i32_28 dim 1 : vector<16x128xf32>, i32 -> vector<16x128xf32>
    %84 = vector.broadcast %82 : f32 to vector<16x128xf32>
    %85 = arith.mulf %84, %83 : vector<16x128xf32>
    %86 = arith.addf %81, %85 : vector<16x128xf32>
    %c0_29 = arith.constant 0 : index
    %c2_30 = arith.constant 2 : index
    %c0_31 = arith.constant 0 : index
    %87 = vector.load %arg5[%c0_29, %c2_30, %c0_31] : memref<2x22x128xf32, #tpu.memory_space<vmem>>, vector<1x16x128xf32>
    %88 = vector.shape_cast %87 : vector<1x16x128xf32> to vector<16x128xf32>
    %c14 = arith.constant 14 : index
    %89 = memref.load %arg2[%c14] : memref<98xf32, #tpu.memory_space<smem>>
    %90 = vector.broadcast %89 : f32 to vector<16x128xf32>
    %91 = arith.mulf %90, %88 : vector<16x128xf32>
    %92 = arith.addf %86, %91 : vector<16x128xf32>
    %c15 = arith.constant 15 : index
    %93 = memref.load %arg2[%c15] : memref<98xf32, #tpu.memory_space<smem>>
    %c127_i32_32 = arith.constant 127 : i32
    %94 = tpu.dynamic_rotate %88 by %c127_i32_32 dim 1 : vector<16x128xf32>, i32 -> vector<16x128xf32>
    %95 = vector.broadcast %93 : f32 to vector<16x128xf32>
    %96 = arith.mulf %95, %94 : vector<16x128xf32>
    %97 = arith.addf %92, %96 : vector<16x128xf32>
    %c16 = arith.constant 16 : index
    %98 = memref.load %arg2[%c16] : memref<98xf32, #tpu.memory_space<smem>>
    %c126_i32_33 = arith.constant 126 : i32
    %99 = tpu.dynamic_rotate %88 by %c126_i32_33 dim 1 : vector<16x128xf32>, i32 -> vector<16x128xf32>
    %100 = vector.broadcast %98 : f32 to vector<16x128xf32>
    %101 = arith.mulf %100, %99 : vector<16x128xf32>
    %102 = arith.addf %97, %101 : vector<16x128xf32>
    %c17 = arith.constant 17 : index
    %103 = memref.load %arg2[%c17] : memref<98xf32, #tpu.memory_space<smem>>
    %c125_i32_34 = arith.constant 125 : i32
    %104 = tpu.dynamic_rotate %88 by %c125_i32_34 dim 1 : vector<16x128xf32>, i32 -> vector<16x128xf32>
    %105 = vector.broadcast %103 : f32 to vector<16x128xf32>
    %106 = arith.mulf %105, %104 : vector<16x128xf32>
    %107 = arith.addf %102, %106 : vector<16x128xf32>
    %c18 = arith.constant 18 : index
    %108 = memref.load %arg2[%c18] : memref<98xf32, #tpu.memory_space<smem>>
    %c124_i32_35 = arith.constant 124 : i32
    %109 = tpu.dynamic_rotate %88 by %c124_i32_35 dim 1 : vector<16x128xf32>, i32 -> vector<16x128xf32>
    %110 = vector.broadcast %108 : f32 to vector<16x128xf32>
    %111 = arith.mulf %110, %109 : vector<16x128xf32>
    %112 = arith.addf %107, %111 : vector<16x128xf32>
    %c19 = arith.constant 19 : index
    %113 = memref.load %arg2[%c19] : memref<98xf32, #tpu.memory_space<smem>>
    %c123_i32_36 = arith.constant 123 : i32
    %114 = tpu.dynamic_rotate %88 by %c123_i32_36 dim 1 : vector<16x128xf32>, i32 -> vector<16x128xf32>
    %115 = vector.broadcast %113 : f32 to vector<16x128xf32>
    %116 = arith.mulf %115, %114 : vector<16x128xf32>
    %117 = arith.addf %112, %116 : vector<16x128xf32>
    %c20 = arith.constant 20 : index
    %118 = memref.load %arg2[%c20] : memref<98xf32, #tpu.memory_space<smem>>
    %c122_i32_37 = arith.constant 122 : i32
    %119 = tpu.dynamic_rotate %88 by %c122_i32_37 dim 1 : vector<16x128xf32>, i32 -> vector<16x128xf32>
    %120 = vector.broadcast %118 : f32 to vector<16x128xf32>
    %121 = arith.mulf %120, %119 : vector<16x128xf32>
    %122 = arith.addf %117, %121 : vector<16x128xf32>
    %c0_38 = arith.constant 0 : index
    %c3_39 = arith.constant 3 : index
    %c0_40 = arith.constant 0 : index
    %123 = vector.load %arg5[%c0_38, %c3_39, %c0_40] : memref<2x22x128xf32, #tpu.memory_space<vmem>>, vector<1x16x128xf32>
    %124 = vector.shape_cast %123 : vector<1x16x128xf32> to vector<16x128xf32>
    %c21 = arith.constant 21 : index
    %125 = memref.load %arg2[%c21] : memref<98xf32, #tpu.memory_space<smem>>
    %126 = vector.broadcast %125 : f32 to vector<16x128xf32>
    %127 = arith.mulf %126, %124 : vector<16x128xf32>
    %128 = arith.addf %122, %127 : vector<16x128xf32>
    %c22 = arith.constant 22 : index
    %129 = memref.load %arg2[%c22] : memref<98xf32, #tpu.memory_space<smem>>
    %c127_i32_41 = arith.constant 127 : i32
    %130 = tpu.dynamic_rotate %124 by %c127_i32_41 dim 1 : vector<16x128xf32>, i32 -> vector<16x128xf32>
    %131 = vector.broadcast %129 : f32 to vector<16x128xf32>
    %132 = arith.mulf %131, %130 : vector<16x128xf32>
    %133 = arith.addf %128, %132 : vector<16x128xf32>
    %c23 = arith.constant 23 : index
    %134 = memref.load %arg2[%c23] : memref<98xf32, #tpu.memory_space<smem>>
    %c126_i32_42 = arith.constant 126 : i32
    %135 = tpu.dynamic_rotate %124 by %c126_i32_42 dim 1 : vector<16x128xf32>, i32 -> vector<16x128xf32>
    %136 = vector.broadcast %134 : f32 to vector<16x128xf32>
    %137 = arith.mulf %136, %135 : vector<16x128xf32>
    %138 = arith.addf %133, %137 : vector<16x128xf32>
    %c24 = arith.constant 24 : index
    %139 = memref.load %arg2[%c24] : memref<98xf32, #tpu.memory_space<smem>>
    %c125_i32_43 = arith.constant 125 : i32
    %140 = tpu.dynamic_rotate %124 by %c125_i32_43 dim 1 : vector<16x128xf32>, i32 -> vector<16x128xf32>
    %141 = vector.broadcast %139 : f32 to vector<16x128xf32>
    %142 = arith.mulf %141, %140 : vector<16x128xf32>
    %143 = arith.addf %138, %142 : vector<16x128xf32>
    %c25 = arith.constant 25 : index
    %144 = memref.load %arg2[%c25] : memref<98xf32, #tpu.memory_space<smem>>
    %c124_i32_44 = arith.constant 124 : i32
    %145 = tpu.dynamic_rotate %124 by %c124_i32_44 dim 1 : vector<16x128xf32>, i32 -> vector<16x128xf32>
    %146 = vector.broadcast %144 : f32 to vector<16x128xf32>
    %147 = arith.mulf %146, %145 : vector<16x128xf32>
    %148 = arith.addf %143, %147 : vector<16x128xf32>
    %c26 = arith.constant 26 : index
    %149 = memref.load %arg2[%c26] : memref<98xf32, #tpu.memory_space<smem>>
    %c123_i32_45 = arith.constant 123 : i32
    %150 = tpu.dynamic_rotate %124 by %c123_i32_45 dim 1 : vector<16x128xf32>, i32 -> vector<16x128xf32>
    %151 = vector.broadcast %149 : f32 to vector<16x128xf32>
    %152 = arith.mulf %151, %150 : vector<16x128xf32>
    %153 = arith.addf %148, %152 : vector<16x128xf32>
    %c27 = arith.constant 27 : index
    %154 = memref.load %arg2[%c27] : memref<98xf32, #tpu.memory_space<smem>>
    %c122_i32_46 = arith.constant 122 : i32
    %155 = tpu.dynamic_rotate %124 by %c122_i32_46 dim 1 : vector<16x128xf32>, i32 -> vector<16x128xf32>
    %156 = vector.broadcast %154 : f32 to vector<16x128xf32>
    %157 = arith.mulf %156, %155 : vector<16x128xf32>
    %158 = arith.addf %153, %157 : vector<16x128xf32>
    %c0_47 = arith.constant 0 : index
    %c4_48 = arith.constant 4 : index
    %c0_49 = arith.constant 0 : index
    %159 = vector.load %arg5[%c0_47, %c4_48, %c0_49] : memref<2x22x128xf32, #tpu.memory_space<vmem>>, vector<1x16x128xf32>
    %160 = vector.shape_cast %159 : vector<1x16x128xf32> to vector<16x128xf32>
    %c28 = arith.constant 28 : index
    %161 = memref.load %arg2[%c28] : memref<98xf32, #tpu.memory_space<smem>>
    %162 = vector.broadcast %161 : f32 to vector<16x128xf32>
    %163 = arith.mulf %162, %160 : vector<16x128xf32>
    %164 = arith.addf %158, %163 : vector<16x128xf32>
    %c29 = arith.constant 29 : index
    %165 = memref.load %arg2[%c29] : memref<98xf32, #tpu.memory_space<smem>>
    %c127_i32_50 = arith.constant 127 : i32
    %166 = tpu.dynamic_rotate %160 by %c127_i32_50 dim 1 : vector<16x128xf32>, i32 -> vector<16x128xf32>
    %167 = vector.broadcast %165 : f32 to vector<16x128xf32>
    %168 = arith.mulf %167, %166 : vector<16x128xf32>
    %169 = arith.addf %164, %168 : vector<16x128xf32>
    %c30 = arith.constant 30 : index
    %170 = memref.load %arg2[%c30] : memref<98xf32, #tpu.memory_space<smem>>
    %c126_i32_51 = arith.constant 126 : i32
    %171 = tpu.dynamic_rotate %160 by %c126_i32_51 dim 1 : vector<16x128xf32>, i32 -> vector<16x128xf32>
    %172 = vector.broadcast %170 : f32 to vector<16x128xf32>
    %173 = arith.mulf %172, %171 : vector<16x128xf32>
    %174 = arith.addf %169, %173 : vector<16x128xf32>
    %c31 = arith.constant 31 : index
    %175 = memref.load %arg2[%c31] : memref<98xf32, #tpu.memory_space<smem>>
    %c125_i32_52 = arith.constant 125 : i32
    %176 = tpu.dynamic_rotate %160 by %c125_i32_52 dim 1 : vector<16x128xf32>, i32 -> vector<16x128xf32>
    %177 = vector.broadcast %175 : f32 to vector<16x128xf32>
    %178 = arith.mulf %177, %176 : vector<16x128xf32>
    %179 = arith.addf %174, %178 : vector<16x128xf32>
    %c32 = arith.constant 32 : index
    %180 = memref.load %arg2[%c32] : memref<98xf32, #tpu.memory_space<smem>>
    %c124_i32_53 = arith.constant 124 : i32
    %181 = tpu.dynamic_rotate %160 by %c124_i32_53 dim 1 : vector<16x128xf32>, i32 -> vector<16x128xf32>
    %182 = vector.broadcast %180 : f32 to vector<16x128xf32>
    %183 = arith.mulf %182, %181 : vector<16x128xf32>
    %184 = arith.addf %179, %183 : vector<16x128xf32>
    %c33 = arith.constant 33 : index
    %185 = memref.load %arg2[%c33] : memref<98xf32, #tpu.memory_space<smem>>
    %c123_i32_54 = arith.constant 123 : i32
    %186 = tpu.dynamic_rotate %160 by %c123_i32_54 dim 1 : vector<16x128xf32>, i32 -> vector<16x128xf32>
    %187 = vector.broadcast %185 : f32 to vector<16x128xf32>
    %188 = arith.mulf %187, %186 : vector<16x128xf32>
    %189 = arith.addf %184, %188 : vector<16x128xf32>
    %c34 = arith.constant 34 : index
    %190 = memref.load %arg2[%c34] : memref<98xf32, #tpu.memory_space<smem>>
    %c122_i32_55 = arith.constant 122 : i32
    %191 = tpu.dynamic_rotate %160 by %c122_i32_55 dim 1 : vector<16x128xf32>, i32 -> vector<16x128xf32>
    %192 = vector.broadcast %190 : f32 to vector<16x128xf32>
    %193 = arith.mulf %192, %191 : vector<16x128xf32>
    %194 = arith.addf %189, %193 : vector<16x128xf32>
    %c0_56 = arith.constant 0 : index
    %c5_57 = arith.constant 5 : index
    %c0_58 = arith.constant 0 : index
    %195 = vector.load %arg5[%c0_56, %c5_57, %c0_58] : memref<2x22x128xf32, #tpu.memory_space<vmem>>, vector<1x16x128xf32>
    %196 = vector.shape_cast %195 : vector<1x16x128xf32> to vector<16x128xf32>
    %c35 = arith.constant 35 : index
    %197 = memref.load %arg2[%c35] : memref<98xf32, #tpu.memory_space<smem>>
    %198 = vector.broadcast %197 : f32 to vector<16x128xf32>
    %199 = arith.mulf %198, %196 : vector<16x128xf32>
    %200 = arith.addf %194, %199 : vector<16x128xf32>
    %c36 = arith.constant 36 : index
    %201 = memref.load %arg2[%c36] : memref<98xf32, #tpu.memory_space<smem>>
    %c127_i32_59 = arith.constant 127 : i32
    %202 = tpu.dynamic_rotate %196 by %c127_i32_59 dim 1 : vector<16x128xf32>, i32 -> vector<16x128xf32>
    %203 = vector.broadcast %201 : f32 to vector<16x128xf32>
    %204 = arith.mulf %203, %202 : vector<16x128xf32>
    %205 = arith.addf %200, %204 : vector<16x128xf32>
    %c37 = arith.constant 37 : index
    %206 = memref.load %arg2[%c37] : memref<98xf32, #tpu.memory_space<smem>>
    %c126_i32_60 = arith.constant 126 : i32
    %207 = tpu.dynamic_rotate %196 by %c126_i32_60 dim 1 : vector<16x128xf32>, i32 -> vector<16x128xf32>
    %208 = vector.broadcast %206 : f32 to vector<16x128xf32>
    %209 = arith.mulf %208, %207 : vector<16x128xf32>
    %210 = arith.addf %205, %209 : vector<16x128xf32>
    %c38 = arith.constant 38 : index
    %211 = memref.load %arg2[%c38] : memref<98xf32, #tpu.memory_space<smem>>
    %c125_i32_61 = arith.constant 125 : i32
    %212 = tpu.dynamic_rotate %196 by %c125_i32_61 dim 1 : vector<16x128xf32>, i32 -> vector<16x128xf32>
    %213 = vector.broadcast %211 : f32 to vector<16x128xf32>
    %214 = arith.mulf %213, %212 : vector<16x128xf32>
    %215 = arith.addf %210, %214 : vector<16x128xf32>
    %c39 = arith.constant 39 : index
    %216 = memref.load %arg2[%c39] : memref<98xf32, #tpu.memory_space<smem>>
    %c124_i32_62 = arith.constant 124 : i32
    %217 = tpu.dynamic_rotate %196 by %c124_i32_62 dim 1 : vector<16x128xf32>, i32 -> vector<16x128xf32>
    %218 = vector.broadcast %216 : f32 to vector<16x128xf32>
    %219 = arith.mulf %218, %217 : vector<16x128xf32>
    %220 = arith.addf %215, %219 : vector<16x128xf32>
    %c40 = arith.constant 40 : index
    %221 = memref.load %arg2[%c40] : memref<98xf32, #tpu.memory_space<smem>>
    %c123_i32_63 = arith.constant 123 : i32
    %222 = tpu.dynamic_rotate %196 by %c123_i32_63 dim 1 : vector<16x128xf32>, i32 -> vector<16x128xf32>
    %223 = vector.broadcast %221 : f32 to vector<16x128xf32>
    %224 = arith.mulf %223, %222 : vector<16x128xf32>
    %225 = arith.addf %220, %224 : vector<16x128xf32>
    %c41 = arith.constant 41 : index
    %226 = memref.load %arg2[%c41] : memref<98xf32, #tpu.memory_space<smem>>
    %c122_i32_64 = arith.constant 122 : i32
    %227 = tpu.dynamic_rotate %196 by %c122_i32_64 dim 1 : vector<16x128xf32>, i32 -> vector<16x128xf32>
    %228 = vector.broadcast %226 : f32 to vector<16x128xf32>
    %229 = arith.mulf %228, %227 : vector<16x128xf32>
    %230 = arith.addf %225, %229 : vector<16x128xf32>
    %c0_65 = arith.constant 0 : index
    %c6_66 = arith.constant 6 : index
    %c0_67 = arith.constant 0 : index
    %231 = vector.load %arg5[%c0_65, %c6_66, %c0_67] : memref<2x22x128xf32, #tpu.memory_space<vmem>>, vector<1x16x128xf32>
    %232 = vector.shape_cast %231 : vector<1x16x128xf32> to vector<16x128xf32>
    %c42 = arith.constant 42 : index
    %233 = memref.load %arg2[%c42] : memref<98xf32, #tpu.memory_space<smem>>
    %234 = vector.broadcast %233 : f32 to vector<16x128xf32>
    %235 = arith.mulf %234, %232 : vector<16x128xf32>
    %236 = arith.addf %230, %235 : vector<16x128xf32>
    %c43 = arith.constant 43 : index
    %237 = memref.load %arg2[%c43] : memref<98xf32, #tpu.memory_space<smem>>
    %c127_i32_68 = arith.constant 127 : i32
    %238 = tpu.dynamic_rotate %232 by %c127_i32_68 dim 1 : vector<16x128xf32>, i32 -> vector<16x128xf32>
    %239 = vector.broadcast %237 : f32 to vector<16x128xf32>
    %240 = arith.mulf %239, %238 : vector<16x128xf32>
    %241 = arith.addf %236, %240 : vector<16x128xf32>
    %c44 = arith.constant 44 : index
    %242 = memref.load %arg2[%c44] : memref<98xf32, #tpu.memory_space<smem>>
    %c126_i32_69 = arith.constant 126 : i32
    %243 = tpu.dynamic_rotate %232 by %c126_i32_69 dim 1 : vector<16x128xf32>, i32 -> vector<16x128xf32>
    %244 = vector.broadcast %242 : f32 to vector<16x128xf32>
    %245 = arith.mulf %244, %243 : vector<16x128xf32>
    %246 = arith.addf %241, %245 : vector<16x128xf32>
    %c45 = arith.constant 45 : index
    %247 = memref.load %arg2[%c45] : memref<98xf32, #tpu.memory_space<smem>>
    %c125_i32_70 = arith.constant 125 : i32
    %248 = tpu.dynamic_rotate %232 by %c125_i32_70 dim 1 : vector<16x128xf32>, i32 -> vector<16x128xf32>
    %249 = vector.broadcast %247 : f32 to vector<16x128xf32>
    %250 = arith.mulf %249, %248 : vector<16x128xf32>
    %251 = arith.addf %246, %250 : vector<16x128xf32>
    %c46 = arith.constant 46 : index
    %252 = memref.load %arg2[%c46] : memref<98xf32, #tpu.memory_space<smem>>
    %c124_i32_71 = arith.constant 124 : i32
    %253 = tpu.dynamic_rotate %232 by %c124_i32_71 dim 1 : vector<16x128xf32>, i32 -> vector<16x128xf32>
    %254 = vector.broadcast %252 : f32 to vector<16x128xf32>
    %255 = arith.mulf %254, %253 : vector<16x128xf32>
    %256 = arith.addf %251, %255 : vector<16x128xf32>
    %c47 = arith.constant 47 : index
    %257 = memref.load %arg2[%c47] : memref<98xf32, #tpu.memory_space<smem>>
    %c123_i32_72 = arith.constant 123 : i32
    %258 = tpu.dynamic_rotate %232 by %c123_i32_72 dim 1 : vector<16x128xf32>, i32 -> vector<16x128xf32>
    %259 = vector.broadcast %257 : f32 to vector<16x128xf32>
    %260 = arith.mulf %259, %258 : vector<16x128xf32>
    %261 = arith.addf %256, %260 : vector<16x128xf32>
    %c48 = arith.constant 48 : index
    %262 = memref.load %arg2[%c48] : memref<98xf32, #tpu.memory_space<smem>>
    %c122_i32_73 = arith.constant 122 : i32
    %263 = tpu.dynamic_rotate %232 by %c122_i32_73 dim 1 : vector<16x128xf32>, i32 -> vector<16x128xf32>
    %264 = vector.broadcast %262 : f32 to vector<16x128xf32>
    %265 = arith.mulf %264, %263 : vector<16x128xf32>
    %266 = arith.addf %261, %265 : vector<16x128xf32>
    %c1_74 = arith.constant 1 : index
    %c0_75 = arith.constant 0 : index
    %c0_76 = arith.constant 0 : index
    %267 = vector.load %arg5[%c1_74, %c0_75, %c0_76] : memref<2x22x128xf32, #tpu.memory_space<vmem>>, vector<1x16x128xf32>
    %268 = vector.shape_cast %267 : vector<1x16x128xf32> to vector<16x128xf32>
    %c49 = arith.constant 49 : index
    %269 = memref.load %arg2[%c49] : memref<98xf32, #tpu.memory_space<smem>>
    %270 = vector.broadcast %269 : f32 to vector<16x128xf32>
    %271 = arith.mulf %270, %268 : vector<16x128xf32>
    %272 = arith.addf %266, %271 : vector<16x128xf32>
    %c50 = arith.constant 50 : index
    %273 = memref.load %arg2[%c50] : memref<98xf32, #tpu.memory_space<smem>>
    %c127_i32_77 = arith.constant 127 : i32
    %274 = tpu.dynamic_rotate %268 by %c127_i32_77 dim 1 : vector<16x128xf32>, i32 -> vector<16x128xf32>
    %275 = vector.broadcast %273 : f32 to vector<16x128xf32>
    %276 = arith.mulf %275, %274 : vector<16x128xf32>
    %277 = arith.addf %272, %276 : vector<16x128xf32>
    %c51 = arith.constant 51 : index
    %278 = memref.load %arg2[%c51] : memref<98xf32, #tpu.memory_space<smem>>
    %c126_i32_78 = arith.constant 126 : i32
    %279 = tpu.dynamic_rotate %268 by %c126_i32_78 dim 1 : vector<16x128xf32>, i32 -> vector<16x128xf32>
    %280 = vector.broadcast %278 : f32 to vector<16x128xf32>
    %281 = arith.mulf %280, %279 : vector<16x128xf32>
    %282 = arith.addf %277, %281 : vector<16x128xf32>
    %c52 = arith.constant 52 : index
    %283 = memref.load %arg2[%c52] : memref<98xf32, #tpu.memory_space<smem>>
    %c125_i32_79 = arith.constant 125 : i32
    %284 = tpu.dynamic_rotate %268 by %c125_i32_79 dim 1 : vector<16x128xf32>, i32 -> vector<16x128xf32>
    %285 = vector.broadcast %283 : f32 to vector<16x128xf32>
    %286 = arith.mulf %285, %284 : vector<16x128xf32>
    %287 = arith.addf %282, %286 : vector<16x128xf32>
    %c53 = arith.constant 53 : index
    %288 = memref.load %arg2[%c53] : memref<98xf32, #tpu.memory_space<smem>>
    %c124_i32_80 = arith.constant 124 : i32
    %289 = tpu.dynamic_rotate %268 by %c124_i32_80 dim 1 : vector<16x128xf32>, i32 -> vector<16x128xf32>
    %290 = vector.broadcast %288 : f32 to vector<16x128xf32>
    %291 = arith.mulf %290, %289 : vector<16x128xf32>
    %292 = arith.addf %287, %291 : vector<16x128xf32>
    %c54 = arith.constant 54 : index
    %293 = memref.load %arg2[%c54] : memref<98xf32, #tpu.memory_space<smem>>
    %c123_i32_81 = arith.constant 123 : i32
    %294 = tpu.dynamic_rotate %268 by %c123_i32_81 dim 1 : vector<16x128xf32>, i32 -> vector<16x128xf32>
    %295 = vector.broadcast %293 : f32 to vector<16x128xf32>
    %296 = arith.mulf %295, %294 : vector<16x128xf32>
    %297 = arith.addf %292, %296 : vector<16x128xf32>
    %c55 = arith.constant 55 : index
    %298 = memref.load %arg2[%c55] : memref<98xf32, #tpu.memory_space<smem>>
    %c122_i32_82 = arith.constant 122 : i32
    %299 = tpu.dynamic_rotate %268 by %c122_i32_82 dim 1 : vector<16x128xf32>, i32 -> vector<16x128xf32>
    %300 = vector.broadcast %298 : f32 to vector<16x128xf32>
    %301 = arith.mulf %300, %299 : vector<16x128xf32>
    %302 = arith.addf %297, %301 : vector<16x128xf32>
    %c1_83 = arith.constant 1 : index
    %c1_84 = arith.constant 1 : index
    %c0_85 = arith.constant 0 : index
    %303 = vector.load %arg5[%c1_83, %c1_84, %c0_85] : memref<2x22x128xf32, #tpu.memory_space<vmem>>, vector<1x16x128xf32>
    %304 = vector.shape_cast %303 : vector<1x16x128xf32> to vector<16x128xf32>
    %c56 = arith.constant 56 : index
    %305 = memref.load %arg2[%c56] : memref<98xf32, #tpu.memory_space<smem>>
    %306 = vector.broadcast %305 : f32 to vector<16x128xf32>
    %307 = arith.mulf %306, %304 : vector<16x128xf32>
    %308 = arith.addf %302, %307 : vector<16x128xf32>
    %c57 = arith.constant 57 : index
    %309 = memref.load %arg2[%c57] : memref<98xf32, #tpu.memory_space<smem>>
    %c127_i32_86 = arith.constant 127 : i32
    %310 = tpu.dynamic_rotate %304 by %c127_i32_86 dim 1 : vector<16x128xf32>, i32 -> vector<16x128xf32>
    %311 = vector.broadcast %309 : f32 to vector<16x128xf32>
    %312 = arith.mulf %311, %310 : vector<16x128xf32>
    %313 = arith.addf %308, %312 : vector<16x128xf32>
    %c58 = arith.constant 58 : index
    %314 = memref.load %arg2[%c58] : memref<98xf32, #tpu.memory_space<smem>>
    %c126_i32_87 = arith.constant 126 : i32
    %315 = tpu.dynamic_rotate %304 by %c126_i32_87 dim 1 : vector<16x128xf32>, i32 -> vector<16x128xf32>
    %316 = vector.broadcast %314 : f32 to vector<16x128xf32>
    %317 = arith.mulf %316, %315 : vector<16x128xf32>
    %318 = arith.addf %313, %317 : vector<16x128xf32>
    %c59 = arith.constant 59 : index
    %319 = memref.load %arg2[%c59] : memref<98xf32, #tpu.memory_space<smem>>
    %c125_i32_88 = arith.constant 125 : i32
    %320 = tpu.dynamic_rotate %304 by %c125_i32_88 dim 1 : vector<16x128xf32>, i32 -> vector<16x128xf32>
    %321 = vector.broadcast %319 : f32 to vector<16x128xf32>
    %322 = arith.mulf %321, %320 : vector<16x128xf32>
    %323 = arith.addf %318, %322 : vector<16x128xf32>
    %c60 = arith.constant 60 : index
    %324 = memref.load %arg2[%c60] : memref<98xf32, #tpu.memory_space<smem>>
    %c124_i32_89 = arith.constant 124 : i32
    %325 = tpu.dynamic_rotate %304 by %c124_i32_89 dim 1 : vector<16x128xf32>, i32 -> vector<16x128xf32>
    %326 = vector.broadcast %324 : f32 to vector<16x128xf32>
    %327 = arith.mulf %326, %325 : vector<16x128xf32>
    %328 = arith.addf %323, %327 : vector<16x128xf32>
    %c61 = arith.constant 61 : index
    %329 = memref.load %arg2[%c61] : memref<98xf32, #tpu.memory_space<smem>>
    %c123_i32_90 = arith.constant 123 : i32
    %330 = tpu.dynamic_rotate %304 by %c123_i32_90 dim 1 : vector<16x128xf32>, i32 -> vector<16x128xf32>
    %331 = vector.broadcast %329 : f32 to vector<16x128xf32>
    %332 = arith.mulf %331, %330 : vector<16x128xf32>
    %333 = arith.addf %328, %332 : vector<16x128xf32>
    %c62 = arith.constant 62 : index
    %334 = memref.load %arg2[%c62] : memref<98xf32, #tpu.memory_space<smem>>
    %c122_i32_91 = arith.constant 122 : i32
    %335 = tpu.dynamic_rotate %304 by %c122_i32_91 dim 1 : vector<16x128xf32>, i32 -> vector<16x128xf32>
    %336 = vector.broadcast %334 : f32 to vector<16x128xf32>
    %337 = arith.mulf %336, %335 : vector<16x128xf32>
    %338 = arith.addf %333, %337 : vector<16x128xf32>
    %c1_92 = arith.constant 1 : index
    %c2_93 = arith.constant 2 : index
    %c0_94 = arith.constant 0 : index
    %339 = vector.load %arg5[%c1_92, %c2_93, %c0_94] : memref<2x22x128xf32, #tpu.memory_space<vmem>>, vector<1x16x128xf32>
    %340 = vector.shape_cast %339 : vector<1x16x128xf32> to vector<16x128xf32>
    %c63 = arith.constant 63 : index
    %341 = memref.load %arg2[%c63] : memref<98xf32, #tpu.memory_space<smem>>
    %342 = vector.broadcast %341 : f32 to vector<16x128xf32>
    %343 = arith.mulf %342, %340 : vector<16x128xf32>
    %344 = arith.addf %338, %343 : vector<16x128xf32>
    %c64 = arith.constant 64 : index
    %345 = memref.load %arg2[%c64] : memref<98xf32, #tpu.memory_space<smem>>
    %c127_i32_95 = arith.constant 127 : i32
    %346 = tpu.dynamic_rotate %340 by %c127_i32_95 dim 1 : vector<16x128xf32>, i32 -> vector<16x128xf32>
    %347 = vector.broadcast %345 : f32 to vector<16x128xf32>
    %348 = arith.mulf %347, %346 : vector<16x128xf32>
    %349 = arith.addf %344, %348 : vector<16x128xf32>
    %c65 = arith.constant 65 : index
    %350 = memref.load %arg2[%c65] : memref<98xf32, #tpu.memory_space<smem>>
    %c126_i32_96 = arith.constant 126 : i32
    %351 = tpu.dynamic_rotate %340 by %c126_i32_96 dim 1 : vector<16x128xf32>, i32 -> vector<16x128xf32>
    %352 = vector.broadcast %350 : f32 to vector<16x128xf32>
    %353 = arith.mulf %352, %351 : vector<16x128xf32>
    %354 = arith.addf %349, %353 : vector<16x128xf32>
    %c66 = arith.constant 66 : index
    %355 = memref.load %arg2[%c66] : memref<98xf32, #tpu.memory_space<smem>>
    %c125_i32_97 = arith.constant 125 : i32
    %356 = tpu.dynamic_rotate %340 by %c125_i32_97 dim 1 : vector<16x128xf32>, i32 -> vector<16x128xf32>
    %357 = vector.broadcast %355 : f32 to vector<16x128xf32>
    %358 = arith.mulf %357, %356 : vector<16x128xf32>
    %359 = arith.addf %354, %358 : vector<16x128xf32>
    %c67 = arith.constant 67 : index
    %360 = memref.load %arg2[%c67] : memref<98xf32, #tpu.memory_space<smem>>
    %c124_i32_98 = arith.constant 124 : i32
    %361 = tpu.dynamic_rotate %340 by %c124_i32_98 dim 1 : vector<16x128xf32>, i32 -> vector<16x128xf32>
    %362 = vector.broadcast %360 : f32 to vector<16x128xf32>
    %363 = arith.mulf %362, %361 : vector<16x128xf32>
    %364 = arith.addf %359, %363 : vector<16x128xf32>
    %c68 = arith.constant 68 : index
    %365 = memref.load %arg2[%c68] : memref<98xf32, #tpu.memory_space<smem>>
    %c123_i32_99 = arith.constant 123 : i32
    %366 = tpu.dynamic_rotate %340 by %c123_i32_99 dim 1 : vector<16x128xf32>, i32 -> vector<16x128xf32>
    %367 = vector.broadcast %365 : f32 to vector<16x128xf32>
    %368 = arith.mulf %367, %366 : vector<16x128xf32>
    %369 = arith.addf %364, %368 : vector<16x128xf32>
    %c69 = arith.constant 69 : index
    %370 = memref.load %arg2[%c69] : memref<98xf32, #tpu.memory_space<smem>>
    %c122_i32_100 = arith.constant 122 : i32
    %371 = tpu.dynamic_rotate %340 by %c122_i32_100 dim 1 : vector<16x128xf32>, i32 -> vector<16x128xf32>
    %372 = vector.broadcast %370 : f32 to vector<16x128xf32>
    %373 = arith.mulf %372, %371 : vector<16x128xf32>
    %374 = arith.addf %369, %373 : vector<16x128xf32>
    %c1_101 = arith.constant 1 : index
    %c3_102 = arith.constant 3 : index
    %c0_103 = arith.constant 0 : index
    %375 = vector.load %arg5[%c1_101, %c3_102, %c0_103] : memref<2x22x128xf32, #tpu.memory_space<vmem>>, vector<1x16x128xf32>
    %376 = vector.shape_cast %375 : vector<1x16x128xf32> to vector<16x128xf32>
    %c70 = arith.constant 70 : index
    %377 = memref.load %arg2[%c70] : memref<98xf32, #tpu.memory_space<smem>>
    %378 = vector.broadcast %377 : f32 to vector<16x128xf32>
    %379 = arith.mulf %378, %376 : vector<16x128xf32>
    %380 = arith.addf %374, %379 : vector<16x128xf32>
    %c71 = arith.constant 71 : index
    %381 = memref.load %arg2[%c71] : memref<98xf32, #tpu.memory_space<smem>>
    %c127_i32_104 = arith.constant 127 : i32
    %382 = tpu.dynamic_rotate %376 by %c127_i32_104 dim 1 : vector<16x128xf32>, i32 -> vector<16x128xf32>
    %383 = vector.broadcast %381 : f32 to vector<16x128xf32>
    %384 = arith.mulf %383, %382 : vector<16x128xf32>
    %385 = arith.addf %380, %384 : vector<16x128xf32>
    %c72 = arith.constant 72 : index
    %386 = memref.load %arg2[%c72] : memref<98xf32, #tpu.memory_space<smem>>
    %c126_i32_105 = arith.constant 126 : i32
    %387 = tpu.dynamic_rotate %376 by %c126_i32_105 dim 1 : vector<16x128xf32>, i32 -> vector<16x128xf32>
    %388 = vector.broadcast %386 : f32 to vector<16x128xf32>
    %389 = arith.mulf %388, %387 : vector<16x128xf32>
    %390 = arith.addf %385, %389 : vector<16x128xf32>
    %c73 = arith.constant 73 : index
    %391 = memref.load %arg2[%c73] : memref<98xf32, #tpu.memory_space<smem>>
    %c125_i32_106 = arith.constant 125 : i32
    %392 = tpu.dynamic_rotate %376 by %c125_i32_106 dim 1 : vector<16x128xf32>, i32 -> vector<16x128xf32>
    %393 = vector.broadcast %391 : f32 to vector<16x128xf32>
    %394 = arith.mulf %393, %392 : vector<16x128xf32>
    %395 = arith.addf %390, %394 : vector<16x128xf32>
    %c74 = arith.constant 74 : index
    %396 = memref.load %arg2[%c74] : memref<98xf32, #tpu.memory_space<smem>>
    %c124_i32_107 = arith.constant 124 : i32
    %397 = tpu.dynamic_rotate %376 by %c124_i32_107 dim 1 : vector<16x128xf32>, i32 -> vector<16x128xf32>
    %398 = vector.broadcast %396 : f32 to vector<16x128xf32>
    %399 = arith.mulf %398, %397 : vector<16x128xf32>
    %400 = arith.addf %395, %399 : vector<16x128xf32>
    %c75 = arith.constant 75 : index
    %401 = memref.load %arg2[%c75] : memref<98xf32, #tpu.memory_space<smem>>
    %c123_i32_108 = arith.constant 123 : i32
    %402 = tpu.dynamic_rotate %376 by %c123_i32_108 dim 1 : vector<16x128xf32>, i32 -> vector<16x128xf32>
    %403 = vector.broadcast %401 : f32 to vector<16x128xf32>
    %404 = arith.mulf %403, %402 : vector<16x128xf32>
    %405 = arith.addf %400, %404 : vector<16x128xf32>
    %c76 = arith.constant 76 : index
    %406 = memref.load %arg2[%c76] : memref<98xf32, #tpu.memory_space<smem>>
    %c122_i32_109 = arith.constant 122 : i32
    %407 = tpu.dynamic_rotate %376 by %c122_i32_109 dim 1 : vector<16x128xf32>, i32 -> vector<16x128xf32>
    %408 = vector.broadcast %406 : f32 to vector<16x128xf32>
    %409 = arith.mulf %408, %407 : vector<16x128xf32>
    %410 = arith.addf %405, %409 : vector<16x128xf32>
    %c1_110 = arith.constant 1 : index
    %c4_111 = arith.constant 4 : index
    %c0_112 = arith.constant 0 : index
    %411 = vector.load %arg5[%c1_110, %c4_111, %c0_112] : memref<2x22x128xf32, #tpu.memory_space<vmem>>, vector<1x16x128xf32>
    %412 = vector.shape_cast %411 : vector<1x16x128xf32> to vector<16x128xf32>
    %c77 = arith.constant 77 : index
    %413 = memref.load %arg2[%c77] : memref<98xf32, #tpu.memory_space<smem>>
    %414 = vector.broadcast %413 : f32 to vector<16x128xf32>
    %415 = arith.mulf %414, %412 : vector<16x128xf32>
    %416 = arith.addf %410, %415 : vector<16x128xf32>
    %c78 = arith.constant 78 : index
    %417 = memref.load %arg2[%c78] : memref<98xf32, #tpu.memory_space<smem>>
    %c127_i32_113 = arith.constant 127 : i32
    %418 = tpu.dynamic_rotate %412 by %c127_i32_113 dim 1 : vector<16x128xf32>, i32 -> vector<16x128xf32>
    %419 = vector.broadcast %417 : f32 to vector<16x128xf32>
    %420 = arith.mulf %419, %418 : vector<16x128xf32>
    %421 = arith.addf %416, %420 : vector<16x128xf32>
    %c79 = arith.constant 79 : index
    %422 = memref.load %arg2[%c79] : memref<98xf32, #tpu.memory_space<smem>>
    %c126_i32_114 = arith.constant 126 : i32
    %423 = tpu.dynamic_rotate %412 by %c126_i32_114 dim 1 : vector<16x128xf32>, i32 -> vector<16x128xf32>
    %424 = vector.broadcast %422 : f32 to vector<16x128xf32>
    %425 = arith.mulf %424, %423 : vector<16x128xf32>
    %426 = arith.addf %421, %425 : vector<16x128xf32>
    %c80 = arith.constant 80 : index
    %427 = memref.load %arg2[%c80] : memref<98xf32, #tpu.memory_space<smem>>
    %c125_i32_115 = arith.constant 125 : i32
    %428 = tpu.dynamic_rotate %412 by %c125_i32_115 dim 1 : vector<16x128xf32>, i32 -> vector<16x128xf32>
    %429 = vector.broadcast %427 : f32 to vector<16x128xf32>
    %430 = arith.mulf %429, %428 : vector<16x128xf32>
    %431 = arith.addf %426, %430 : vector<16x128xf32>
    %c81 = arith.constant 81 : index
    %432 = memref.load %arg2[%c81] : memref<98xf32, #tpu.memory_space<smem>>
    %c124_i32_116 = arith.constant 124 : i32
    %433 = tpu.dynamic_rotate %412 by %c124_i32_116 dim 1 : vector<16x128xf32>, i32 -> vector<16x128xf32>
    %434 = vector.broadcast %432 : f32 to vector<16x128xf32>
    %435 = arith.mulf %434, %433 : vector<16x128xf32>
    %436 = arith.addf %431, %435 : vector<16x128xf32>
    %c82 = arith.constant 82 : index
    %437 = memref.load %arg2[%c82] : memref<98xf32, #tpu.memory_space<smem>>
    %c123_i32_117 = arith.constant 123 : i32
    %438 = tpu.dynamic_rotate %412 by %c123_i32_117 dim 1 : vector<16x128xf32>, i32 -> vector<16x128xf32>
    %439 = vector.broadcast %437 : f32 to vector<16x128xf32>
    %440 = arith.mulf %439, %438 : vector<16x128xf32>
    %441 = arith.addf %436, %440 : vector<16x128xf32>
    %c83 = arith.constant 83 : index
    %442 = memref.load %arg2[%c83] : memref<98xf32, #tpu.memory_space<smem>>
    %c122_i32_118 = arith.constant 122 : i32
    %443 = tpu.dynamic_rotate %412 by %c122_i32_118 dim 1 : vector<16x128xf32>, i32 -> vector<16x128xf32>
    %444 = vector.broadcast %442 : f32 to vector<16x128xf32>
    %445 = arith.mulf %444, %443 : vector<16x128xf32>
    %446 = arith.addf %441, %445 : vector<16x128xf32>
    %c1_119 = arith.constant 1 : index
    %c5_120 = arith.constant 5 : index
    %c0_121 = arith.constant 0 : index
    %447 = vector.load %arg5[%c1_119, %c5_120, %c0_121] : memref<2x22x128xf32, #tpu.memory_space<vmem>>, vector<1x16x128xf32>
    %448 = vector.shape_cast %447 : vector<1x16x128xf32> to vector<16x128xf32>
    %c84 = arith.constant 84 : index
    %449 = memref.load %arg2[%c84] : memref<98xf32, #tpu.memory_space<smem>>
    %450 = vector.broadcast %449 : f32 to vector<16x128xf32>
    %451 = arith.mulf %450, %448 : vector<16x128xf32>
    %452 = arith.addf %446, %451 : vector<16x128xf32>
    %c85 = arith.constant 85 : index
    %453 = memref.load %arg2[%c85] : memref<98xf32, #tpu.memory_space<smem>>
    %c127_i32_122 = arith.constant 127 : i32
    %454 = tpu.dynamic_rotate %448 by %c127_i32_122 dim 1 : vector<16x128xf32>, i32 -> vector<16x128xf32>
    %455 = vector.broadcast %453 : f32 to vector<16x128xf32>
    %456 = arith.mulf %455, %454 : vector<16x128xf32>
    %457 = arith.addf %452, %456 : vector<16x128xf32>
    %c86 = arith.constant 86 : index
    %458 = memref.load %arg2[%c86] : memref<98xf32, #tpu.memory_space<smem>>
    %c126_i32_123 = arith.constant 126 : i32
    %459 = tpu.dynamic_rotate %448 by %c126_i32_123 dim 1 : vector<16x128xf32>, i32 -> vector<16x128xf32>
    %460 = vector.broadcast %458 : f32 to vector<16x128xf32>
    %461 = arith.mulf %460, %459 : vector<16x128xf32>
    %462 = arith.addf %457, %461 : vector<16x128xf32>
    %c87 = arith.constant 87 : index
    %463 = memref.load %arg2[%c87] : memref<98xf32, #tpu.memory_space<smem>>
    %c125_i32_124 = arith.constant 125 : i32
    %464 = tpu.dynamic_rotate %448 by %c125_i32_124 dim 1 : vector<16x128xf32>, i32 -> vector<16x128xf32>
    %465 = vector.broadcast %463 : f32 to vector<16x128xf32>
    %466 = arith.mulf %465, %464 : vector<16x128xf32>
    %467 = arith.addf %462, %466 : vector<16x128xf32>
    %c88 = arith.constant 88 : index
    %468 = memref.load %arg2[%c88] : memref<98xf32, #tpu.memory_space<smem>>
    %c124_i32_125 = arith.constant 124 : i32
    %469 = tpu.dynamic_rotate %448 by %c124_i32_125 dim 1 : vector<16x128xf32>, i32 -> vector<16x128xf32>
    %470 = vector.broadcast %468 : f32 to vector<16x128xf32>
    %471 = arith.mulf %470, %469 : vector<16x128xf32>
    %472 = arith.addf %467, %471 : vector<16x128xf32>
    %c89 = arith.constant 89 : index
    %473 = memref.load %arg2[%c89] : memref<98xf32, #tpu.memory_space<smem>>
    %c123_i32_126 = arith.constant 123 : i32
    %474 = tpu.dynamic_rotate %448 by %c123_i32_126 dim 1 : vector<16x128xf32>, i32 -> vector<16x128xf32>
    %475 = vector.broadcast %473 : f32 to vector<16x128xf32>
    %476 = arith.mulf %475, %474 : vector<16x128xf32>
    %477 = arith.addf %472, %476 : vector<16x128xf32>
    %c90 = arith.constant 90 : index
    %478 = memref.load %arg2[%c90] : memref<98xf32, #tpu.memory_space<smem>>
    %c122_i32_127 = arith.constant 122 : i32
    %479 = tpu.dynamic_rotate %448 by %c122_i32_127 dim 1 : vector<16x128xf32>, i32 -> vector<16x128xf32>
    %480 = vector.broadcast %478 : f32 to vector<16x128xf32>
    %481 = arith.mulf %480, %479 : vector<16x128xf32>
    %482 = arith.addf %477, %481 : vector<16x128xf32>
    %c1_128 = arith.constant 1 : index
    %c6_129 = arith.constant 6 : index
    %c0_130 = arith.constant 0 : index
    %483 = vector.load %arg5[%c1_128, %c6_129, %c0_130] : memref<2x22x128xf32, #tpu.memory_space<vmem>>, vector<1x16x128xf32>
    %484 = vector.shape_cast %483 : vector<1x16x128xf32> to vector<16x128xf32>
    %c91 = arith.constant 91 : index
    %485 = memref.load %arg2[%c91] : memref<98xf32, #tpu.memory_space<smem>>
    %486 = vector.broadcast %485 : f32 to vector<16x128xf32>
    %487 = arith.mulf %486, %484 : vector<16x128xf32>
    %488 = arith.addf %482, %487 : vector<16x128xf32>
    %c92 = arith.constant 92 : index
    %489 = memref.load %arg2[%c92] : memref<98xf32, #tpu.memory_space<smem>>
    %c127_i32_131 = arith.constant 127 : i32
    %490 = tpu.dynamic_rotate %484 by %c127_i32_131 dim 1 : vector<16x128xf32>, i32 -> vector<16x128xf32>
    %491 = vector.broadcast %489 : f32 to vector<16x128xf32>
    %492 = arith.mulf %491, %490 : vector<16x128xf32>
    %493 = arith.addf %488, %492 : vector<16x128xf32>
    %c93 = arith.constant 93 : index
    %494 = memref.load %arg2[%c93] : memref<98xf32, #tpu.memory_space<smem>>
    %c126_i32_132 = arith.constant 126 : i32
    %495 = tpu.dynamic_rotate %484 by %c126_i32_132 dim 1 : vector<16x128xf32>, i32 -> vector<16x128xf32>
    %496 = vector.broadcast %494 : f32 to vector<16x128xf32>
    %497 = arith.mulf %496, %495 : vector<16x128xf32>
    %498 = arith.addf %493, %497 : vector<16x128xf32>
    %c94 = arith.constant 94 : index
    %499 = memref.load %arg2[%c94] : memref<98xf32, #tpu.memory_space<smem>>
    %c125_i32_133 = arith.constant 125 : i32
    %500 = tpu.dynamic_rotate %484 by %c125_i32_133 dim 1 : vector<16x128xf32>, i32 -> vector<16x128xf32>
    %501 = vector.broadcast %499 : f32 to vector<16x128xf32>
    %502 = arith.mulf %501, %500 : vector<16x128xf32>
    %503 = arith.addf %498, %502 : vector<16x128xf32>
    %c95 = arith.constant 95 : index
    %504 = memref.load %arg2[%c95] : memref<98xf32, #tpu.memory_space<smem>>
    %c124_i32_134 = arith.constant 124 : i32
    %505 = tpu.dynamic_rotate %484 by %c124_i32_134 dim 1 : vector<16x128xf32>, i32 -> vector<16x128xf32>
    %506 = vector.broadcast %504 : f32 to vector<16x128xf32>
    %507 = arith.mulf %506, %505 : vector<16x128xf32>
    %508 = arith.addf %503, %507 : vector<16x128xf32>
    %c96 = arith.constant 96 : index
    %509 = memref.load %arg2[%c96] : memref<98xf32, #tpu.memory_space<smem>>
    %c123_i32_135 = arith.constant 123 : i32
    %510 = tpu.dynamic_rotate %484 by %c123_i32_135 dim 1 : vector<16x128xf32>, i32 -> vector<16x128xf32>
    %511 = vector.broadcast %509 : f32 to vector<16x128xf32>
    %512 = arith.mulf %511, %510 : vector<16x128xf32>
    %513 = arith.addf %508, %512 : vector<16x128xf32>
    %c97 = arith.constant 97 : index
    %514 = memref.load %arg2[%c97] : memref<98xf32, #tpu.memory_space<smem>>
    %c122_i32_136 = arith.constant 122 : i32
    %515 = tpu.dynamic_rotate %484 by %c122_i32_136 dim 1 : vector<16x128xf32>, i32 -> vector<16x128xf32>
    %516 = vector.broadcast %514 : f32 to vector<16x128xf32>
    %517 = arith.mulf %516, %515 : vector<16x128xf32>
    %518 = arith.addf %513, %517 : vector<16x128xf32>
    %519 = vector.extract_strided_slice %518 {offsets = [0, 0], sizes = [16, 16], strides = [1, 1]} : vector<16x128xf32> to vector<16x16xf32>
    %c0_137 = arith.constant 0 : index
    %520 = memref.load %arg3[%c0_137] : memref<1xf32, #tpu.memory_space<smem>>
    %521 = vector.broadcast %520 : f32 to vector<16x16xf32>
    %522 = arith.addf %519, %521 : vector<16x16xf32>
    %cst_138 = arith.constant 0.000000e+00 : f32
    %523 = vector.broadcast %cst_138 : f32 to vector<16x16xf32>
    %524 = arith.subf %523, %522 : vector<16x16xf32>
    %525 = math.exp %524 : vector<16x16xf32>
    %cst_139 = arith.constant 1.000000e+00 : f32
    %526 = vector.broadcast %cst_139 : f32 to vector<16x16xf32>
    %527 = arith.addf %526, %525 : vector<16x16xf32>
    %528 = tpu.reciprocal %527 : vector<16x16xf32> -> vector<16x16xf32>
    %529 = vector.shape_cast %528 : vector<16x16xf32> to vector<1x16x16xf32>
    %530 = vector.broadcast %529 : vector<1x16x16xf32> to vector<4x16x16xf32>
    %531 = arith.mulf %1, %530 : vector<4x16x16xf32>
    %c0_140 = arith.constant 0 : index
    %c0_141 = arith.constant 0 : index
    %c0_142 = arith.constant 0 : index
    %c0_143 = arith.constant 0 : index
    %532 = vector.load %arg4[%c0_140, %c0_141, %c0_142, %c0_143] : memref<1x4x16x16xf32, #tpu.memory_space<vmem>>, vector<1x4x16x16xf32>
    %533 = vector.shape_cast %532 : vector<1x4x16x16xf32> to vector<4x16x16xf32>
    %534 = vector.shape_cast %531 : vector<4x16x16xf32> to vector<1x4x16x16xf32>
    tpu.vector_store %arg4[%c0_140, %c0_141, %c0_142, %c0_143], %534 {strides = array<i32>} : memref<1x4x16x16xf32, #tpu.memory_space<vmem>>, vector<1x4x16x16xf32>,
    return
  }
  func.func @transform_0(%arg0: i32) -> (i32, i32, i32, i32) {
    %c0_i32 = arith.constant 0 : i32
    %c0_i32_0 = arith.constant 0 : i32
    %c0_i32_1 = arith.constant 0 : i32
    %c0_i32_2 = arith.constant 0 : i32
    return %arg0, %c0_i32, %c0_i32_0, %c0_i32_1 : i32, i32, i32, i32
  }
  func.func @transform_1(%arg0: i32) -> i32 {
    %c0_i32 = arith.constant 0 : i32
    %c0_i32_0 = arith.constant 0 : i32
    return %c0_i32 : i32
  }
  func.func @transform_2(%arg0: i32) -> i32 {
    %c0_i32 = arith.constant 0 : i32
    %c0_i32_0 = arith.constant 0 : i32
    return %c0_i32 : i32
  }
  func.func @transform_3(%arg0: i32) -> (i32, i32, i32, i32) {
    %c0_i32 = arith.constant 0 : i32
    %c0_i32_0 = arith.constant 0 : i32
    %c0_i32_1 = arith.constant 0 : i32
    %c0_i32_2 = arith.constant 0 : i32
    return %arg0, %c0_i32, %c0_i32_0, %c0_i32_1 : i32, i32, i32, i32
  }
}

</mosaic_0001>

<llo_original>
// kernel: spatial_gate_forward.1
$region0: #{spatial_gate_forward.1}
  #allocation0 [shape = 'u32[]', space=smem, size = 0x4, offset = 0x4, fixed_abs, tag = 'smem constant byte address 0x4 - core index']
  #allocation1 [shape = 'u32[144,128]{1,0:T(1,128)}', space=vmem, size = 0x12000, scoped, tag = 'internal scratch']
  #allocation2 [shape = 'f32[2,22,128]{2,1,0:T(8,128)}', space=vmem, size = 0x6000, scoped, tag = 'scratch operand']
  #allocation3 [shape = 'f32[1]{0:T(128)S(6)}', space=smem, size = 0x200, scoped, tag = 'scoped memory for spatial_gate_forward.1']
  %s0 = inlined_call_operand.hbm [shape: f32[2,4,16,16], index: 0, kind: input, shape index: {}]
  %s1 = inlined_call_operand.vmem [shape: f32[98], index: 1, kind: input, shape index: {}]
  %s2 = inlined_call_operand.<no memory space> [shape: f32[1], index: 2, kind: input, shape index: {}]
  %s3 = inlined_call_operand.hbm [shape: f32[2,4,16,16], index: 3, kind: output, shape index: {}]
  %s4 = sld [smem:[#allocation0]]
  $region53: #{spatial_gate_forward.1} parent=0
    _
  %s6 = ssub.s32 1, %s4
  %s7 = scalar_select 0, %s6, %s4
  %8 = sst [smem:[#allocation3]] %s2
  $region1: #{spatial_gate_forward.1} parent=0
    #allocation4 [shape = 'u8[65536]{0}', space=vmem, size = 0x10000, scoped, tag = 'input window, operand 0']
    #allocation5 [shape = 's32[2]{0}', space=sflag, size = 0x8, scoped, tag = 'scoped memory for spatial_gate_forward.1']
    #allocation6 [shape = 's32[2]{0}', space=sflag, size = 0x8, scoped, tag = 'scoped memory for spatial_gate_forward.1']
    #allocation7 [shape = 's32[2]{0}', space=sflag, size = 0x8, scoped, tag = 'scoped memory for spatial_gate_forward.1']
    #allocation8 [shape = 'u8[512]{0}', space=smem, size = 0x200, scoped, tag = 'input window, operand 1, single buffered']
    #allocation9 [shape = 'u8[65536]{0}', space=vmem, size = 0x10000, scoped, tag = 'output window, operand 0']
    %9 = vsyncpa [#allocation5], 0
    %s10 = scalar_lea.sflag [#allocation5], 1
    %11 = vsyncpa %s10, 0
    %12 = vsyncpa [#allocation7], 0
    %13 = vsyncpa [#allocation6], 0
    %s14 = scalar_lea.sflag [#allocation6], 1
    %15 = vsyncpa %s14, 0
    loop: start=0, step=1, limit=4
    $region2: #{spatial_gate_forward.1} parent=1 // loop_pre_header
      _
    $region3: #{spatial_gate_forward.1} parent=1 // loop_header
      %s17 = sphi 0, %s21
      %p18 = scmp.ge.s32.totalorder %s17, 4
      %s27 = sphi 0, %s29
      %s30 = sphi 0, %s27
      %s31 = sphi 0, %s30
      %s47 = sphi 0, %s31
      %s51 = sphi 0, %s51
      %s53 = sphi 0, %s51
      %s54 = sphi 0, %s53
      %s68 = sphi 0, %s54
      %s72 = sphi 0, %s72
      %s74 = sphi 0, %s72
      %s75 = sphi 0, %s74
      %s89 = sphi 0, %s75
      %s95 = sphi 0, %s97
      %s98 = sphi 0, %s95
      %s99 = sphi 0, %s98
      %s115 = sphi 0, %s99
    $region4: #{spatial_gate_forward.1} parent=1 // loop_header_branch
      %20 = sbr.rel (%p18) target = $region8
    $region5: #{spatial_gate_forward.1} parent=1 // loop_body
      %s22 = ssub.s32 %s17, 1
      %s23 = ssub.s32 %s17, 2
      %s24 = sadd.s32 %s17, 1
      %s25 = ssub.s32 %s17, %s24
      %p26 = scmp.eq.s32.totalorder %s25, 0
      %s28 = sadd.s32 %s27, 1
      %s29 = scalar_select %p26, %s27, %s28
      %p32 = pneg %p26
      %p33 = scmp.eq.s32.totalorder %s17, 1
      %p34 = por %p32, %p33
      %p35 = scmp.ne.s32.totalorder %s27, %s30
      %p36 = scmp.eq.s32.totalorder %s17, 0
      %p37 = por %p35, %p36
      %p38 = scmp.ne.s32.totalorder %s27, %s30
      %p39 = scmp.eq.s32.totalorder %s22, 1
      %p40 = por %p38, %p39
      %p41 = scmp.ne.s32.totalorder %s30, %s31
      %p42 = scmp.eq.s32.totalorder %s22, 0
      %p43 = por %p41, %p42
      %p44 = scmp.ne.s32.totalorder %s30, %s31
      %p45 = scmp.eq.s32.totalorder %s23, 1
      %p46 = por %p44, %p45
      %p48 = scmp.ne.s32.totalorder %s31, %s47
      %p49 = scmp.eq.s32.totalorder %s23, 0
      %p50 = por %p48, %p49
      %s52 = sadd.s32 %s51, 1
      %p55 = scmp.eq.s32.totalorder %s17, 1
      %p56 = scmp.ne.s32.totalorder %s51, %s53
      %p57 = scmp.eq.s32.totalorder %s17, 0
      %p58 = por %p56, %p57
      %p59 = scmp.ne.s32.totalorder %s51, %s53
      %p60 = scmp.eq.s32.totalorder %s22, 1
      %p61 = por %p59, %p60
      %p62 = scmp.ne.s32.totalorder %s53, %s54
      %p63 = scmp.eq.s32.totalorder %s22, 0
      %p64 = por %p62, %p63
      %p65 = scmp.ne.s32.totalorder %s53, %s54
      %p66 = scmp.eq.s32.totalorder %s23, 1
      %p67 = por %p65, %p66
      %p69 = scmp.ne.s32.totalorder %s54, %s68
      %p70 = scmp.eq.s32.totalorder %s23, 0
      %p71 = por %p69, %p70
      %s73 = sadd.s32 %s72, 1
      %p76 = scmp.eq.s32.totalorder %s17, 1
      %p77 = scmp.ne.s32.totalorder %s72, %s74
      %p78 = scmp.eq.s32.totalorder %s17, 0
      %p79 = por %p77, %p78
      %p80 = scmp.ne.s32.totalorder %s72, %s74
      %p81 = scmp.eq.s32.totalorder %s22, 1
      %p82 = por %p80, %p81
      %p83 = scmp.ne.s32.totalorder %s74, %s75
      %p84 = scmp.eq.s32.totalorder %s22, 0
      %p85 = por %p83, %p84
      %p86 = scmp.ne.s32.totalorder %s74, %s75
      %p87 = scmp.eq.s32.totalorder %s23, 1
      %p88 = por %p86, %p87
      %p90 = scmp.ne.s32.totalorder %s75, %s89
      %p91 = scmp.eq.s32.totalorder %s23, 0
      %p92 = por %p90, %p91
      %s93 = ssub.s32 %s17, %s24
      %p94 = scmp.eq.s32.totalorder %s93, 0
      %s96 = sadd.s32 %s95, 1
      %s97 = scalar_select %p94, %s95, %s96
      %p100 = pneg %p94
      %p101 = scmp.eq.s32.totalorder %s17, 1
      %p102 = por %p100, %p101
      %p103 = scmp.ne.s32.totalorder %s95, %s98
      %p104 = scmp.eq.s32.totalorder %s17, 0
      %p105 = por %p103, %p104
      %p106 = scmp.ne.s32.totalorder %s95, %s98
      %p107 = scmp.eq.s32.totalorder %s22, 1
      %p108 = por %p106, %p107
      %p109 = scmp.ne.s32.totalorder %s98, %s99
      %p110 = scmp.eq.s32.totalorder %s22, 0
      %p111 = por %p109, %p110
      %p112 = scmp.ne.s32.totalorder %s98, %s99
      %p113 = scmp.eq.s32.totalorder %s23, 1
      %p114 = por %p112, %p113
      %p116 = scmp.ne.s32.totalorder %s99, %s115
      %p117 = scmp.eq.s32.totalorder %s23, 0
      %p118 = por %p116, %p117
      %p119 = scmp.le.s32.totalorder 1, %s17
      %p120 = scmp.lt.s32.totalorder %s17, 3
      %p121 = pnand %p119, %p120
      %p122 = pneg %p121
      // Predicated region
      $region9: #{spatial_gate_forward.1} parent=5 // pred_check
        _
      $region10: #{spatial_gate_forward.1} parent=5 // pred_check_branch
        %124 = sbr.rel (%p121) target = $region12
      $region11: #{spatial_gate_forward.1} parent=5 // pred_region
        %s125 = ssub.s32 %s17, 1
        // Predicated region
        $region13: #{spatial_gate_forward.1} parent=11 // pred_check
          %p126 = pneg %p64
        $region14: #{spatial_gate_forward.1} parent=11 // pred_check_branch
          %128 = sbr.rel (%p126) target = $region16
        $region15: #{spatial_gate_forward.1} parent=11 // pred_region
          %s130 = ssub.s32 16, 16
          %131 = vsyncadd [#allocation7], %s130
          %s133 = sshll.u32 %s1, 4
          %s134 = int_to_ptr.vmem [resolvable:$true] %s133
          %136 = dma.vmem_to_smem %s134, 16, [#allocation8], [#allocation7]
        $region16: #{spatial_gate_forward.1} parent=11 // pred_fallthru
          _
        // Predicated region
        $region17: #{spatial_gate_forward.1} parent=11 // pred_check
          %p137 = pneg %p85
        $region18: #{spatial_gate_forward.1} parent=11 // pred_check_branch
          %139 = sbr.rel (%p137) target = $region20
        $region19: #{spatial_gate_forward.1} parent=11 // pred_region
          _
        $region20: #{spatial_gate_forward.1} parent=11 // pred_fallthru
          _
      $region12: #{spatial_gate_forward.1} parent=5 // pred_fallthru
        _
      %p140 = scmp.lt.s32.totalorder %s17, 2
      // Predicated region
      $region21: #{spatial_gate_forward.1} parent=5 // pred_check
        %p141 = pneg %p140
      $region22: #{spatial_gate_forward.1} parent=5 // pred_check_branch
        %143 = sbr.rel (%p141) target = $region24
      $region23: #{spatial_gate_forward.1} parent=5 // pred_region
        // Predicated region
        $region25: #{spatial_gate_forward.1} parent=23 // pred_check
          %p144 = pneg %p37
        $region26: #{spatial_gate_forward.1} parent=23 // pred_check_branch
          %146 = sbr.rel (%p144) target = $region28
        $region27: #{spatial_gate_forward.1} parent=23 // pred_region
          %s147 = sand.u32 %s27, 1
          %s148 = scalar_lea.sflag [#allocation5], %s147
          %s149 = sand.u32 %s27, 1
          %s150 = smul.addr %s149, 64
          %s151 = scalar_lea.vmem [#allocation4], %s150
          %s153 = ssub.s32 1024, 1024
          %154 = vsyncadd %s148, %s153
          %s155 = smul.addr %s17, 8
          %s156 = smul.addr %s155, 128
          %s157 = scalar_lea.hbm %s0, %s156
          %s158 = sshll.u32 %s151, 4
          %s159 = int_to_ptr.vmem [resolvable:$true] %s158
          %164 = dma.hbm_to_vmem [thread:$0]  %s157, 1024, %s159, %s148, 128, 128, 8
        $region28: #{spatial_gate_forward.1} parent=23 // pred_fallthru
          _
      $region24: #{spatial_gate_forward.1} parent=5 // pred_fallthru
        _
      %p165 = scmp.le.s32.totalorder 1, %s17
      %p166 = scmp.lt.s32.totalorder %s17, 3
      %p167 = pnand %p165, %p166
      %p168 = pneg %p167
      // Predicated region
      $region29: #{spatial_gate_forward.1} parent=5 // pred_check
        _
      $region30: #{spatial_gate_forward.1} parent=5 // pred_check_branch
        %170 = sbr.rel (%p167) target = $region32
      $region31: #{spatial_gate_forward.1} parent=5 // pred_region
        %s171 = ssub.s32 %s17, 1
        %s172 = sand.u32 %s30, 1
        %s173 = scalar_lea.sflag [#allocation5], %s172
        %s174 = sand.u32 %s30, 1
        %s175 = smul.addr %s174, 64
        %s176 = scalar_lea.vmem [#allocation4], %s175
        // Predicated region
        $region33: #{spatial_gate_forward.1} parent=31 // pred_check
          %p177 = pneg %p43
        $region34: #{spatial_gate_forward.1} parent=31 // pred_check_branch
          %179 = sbr.rel (%p177) target = $region36
        $region35: #{spatial_gate_forward.1} parent=31 // pred_region
          %180 = dma.done %s173, 1024
        $region36: #{spatial_gate_forward.1} parent=31 // pred_fallthru
          _
        // Predicated region
        $region37: #{spatial_gate_forward.1} parent=31 // pred_check
          %p181 = pneg %p64
        $region38: #{spatial_gate_forward.1} parent=31 // pred_check_branch
          %183 = sbr.rel (%p181) target = $region40
        $region39: #{spatial_gate_forward.1} parent=31 // pred_region
          %184 = dma.done [#allocation7], 16
        $region40: #{spatial_gate_forward.1} parent=31 // pred_fallthru
          _
        %185 = sfence
        %s186 = sand.u32 %s30, 1
        %s187 = scalar_lea.sflag [#allocation5], %s186
        %s188 = sand.u32 %s30, 1
        %s189 = smul.addr %s188, 64
        %s190 = scalar_lea.vmem [#allocation4], %s189
        %p191 = pneg %p43
        %p192 = pneg %p40
        %p193 = pneg %p64
        %p194 = pneg %p61
        %p195 = pneg %p85
        %p196 = pneg %p82
        %p197 = pneg %p111
        %p198 = pneg %p108
        %s199 = sand.u32 %s98, 1
        %s200 = scalar_lea.sflag [#allocation6], %s199
        %s201 = sand.u32 %s98, 1
        %s202 = smul.addr %s201, 64
        %s203 = scalar_lea.vmem [#allocation9], %s202
        %v204 = vld [vmem:[%s176] sm:$0xff]
        %v205 = vld [vmem:[%s176 + $0x8] sm:$0xff]
        %v206 = vld [vmem:[%s176 + $0x10] sm:$0xff]
        %v207 = vld [vmem:[%s176 + $0x18] sm:$0xff]
        %v208 = vld [vmem:[%s176 + $0x20] sm:$0xff]
        %v209 = vld [vmem:[%s176 + $0x28] sm:$0xff]
        %v210 = vld [vmem:[%s176 + $0x30] sm:$0xff]
        %v211 = vld [vmem:[%s176 + $0x38] sm:$0xff]
        %vm212 = vcmask 130048
        %v213 = vsel %vm212, %v204, -inf
        %v214 = vsel %vm212, %v206, -inf
        %v215 = vsel %vm212, %v208, -inf
        %v216 = vmax.f32 %v213, %v215
        %v217 = vsel %vm212, %v210, -inf
        %v218 = vmax.f32 %v214, %v217
        %v219 = vmax.f32 %v216, %v218
        %v220 = vsel %vm212, %v205, -inf
        %v221 = vsel %vm212, %v207, -inf
        %v222 = vsel %vm212, %v209, -inf
        %v223 = vmax.f32 %v220, %v222
        %v224 = vsel %vm212, %v211, -inf
        %v225 = vmax.f32 %v221, %v224
        %v226 = vmax.f32 %v223, %v225
        %v227 = vsel %vm212, %v204, 0.0
        %v228 = vsel %vm212, %v206, 0.0
        %v229 = vadd.f32 %v227, %v228
        %v230 = vsel %vm212, %v208, 0.0
        %v231 = vadd.f32 %v229, %v230
        %v232 = vsel %vm212, %v210, 0.0
        %v233 = vadd.f32 %v231, %v232
        %v234 = vsel %vm212, %v205, 0.0
        %v235 = vsel %vm212, %v207, 0.0
        %v236 = vadd.f32 %v234, %v235
        %v237 = vsel %vm212, %v209, 0.0
        %v238 = vadd.f32 %v236, %v237
        %v239 = vsel %vm212, %v211, 0.0
        %v240 = vadd.f32 %v238, %v239
        %v241 = vmul.f32 %v233, 0.25
        %v242 = vmul.f32 %v240, 0.25
        %243 = vst [vmem:[#allocation2] sm:$0xff] 0.0
        %244 = vst [vmem:[#allocation2 + $0x8] sm:$0xff] 0.0
        %245 = vst [vmem:[#allocation2 + $0x10] sm:$0x3f] 0.0
        %246 = vst [vmem:[#allocation2 + $0x18] sm:$0xff] 0.0
        %247 = vst [vmem:[#allocation2 + $0x20] sm:$0xff] 0.0
        %248 = vst [vmem:[#allocation2 + $0x28] sm:$0x3f] 0.0
        %251 = vrot.lane.b32.xlu0 %v219, 3
        %v252 = vpop.permute.xlu0 %251
        %253 = vrot.lane.b32.xlu0 %v226, 3
        %v254 = vpop.permute.xlu0 %253
        %vm257 = vcmask 154648
        %258 = vst.msk [vmem:[#allocation2 + $0x3] sm:$0xff] %vm257, %v252
        %259 = vst.msk [vmem:[#allocation2 + $0xb] sm:$0xff] %vm257, %v254
        %262 = vrot.lane.b32.xlu0 %v241, 3
        %v263 = vpop.permute.xlu0 %262
        %264 = vrot.lane.b32.xlu0 %v242, 3
        %v265 = vpop.permute.xlu0 %264
        %s268 = scalar_lea.vmem [#allocation2], 24
        %269 = vst.msk [vmem:[%s268 + $0x3] sm:$0xff] %vm257, %v263
        %270 = vst.msk [vmem:[%s268 + $0xb] sm:$0xff] %vm257, %v265
        %v271 = vld [vmem:[#allocation2] sm:$0xff]
        %v272 = vld [vmem:[#allocation2 + $0x8] sm:$0xff]
        %s273 = sld [smem:[#allocation8]]
        %v274 = vstv %s273
        %v275 = vmul.f32 %v274, %v271
        %v276 = vmul.f32 %v274, %v272
        %v277 = vadd.f32 %v275, 0.0
        %v278 = vadd.f32 %v276, 0.0
        %s279 = sld [smem:[#allocation8 + $0x1]]
        %280 = vrot.lane.b32.xlu0 %v271, 127
        %v281 = vpop.permute.xlu0 %280
        %282 = vrot.lane.b32.xlu0 %v272, 127
        %v283 = vpop.permute.xlu0 %282
        %v284 = vstv %s279
        %v285 = vmul.f32 %v284, %v281
        %v286 = vmul.f32 %v284, %v283
        %v287 = vadd.f32 %v277, %v285
        %v288 = vadd.f32 %v278, %v286
        %s289 = sld [smem:[#allocation8 + $0x2]]
        %290 = vrot.lane.b32.xlu0 %v271, 126
        %v291 = vpop.permute.xlu0 %290
        %292 = vrot.lane.b32.xlu0 %v272, 126
        %v293 = vpop.permute.xlu0 %292
        %v294 = vstv %s289
        %v295 = vmul.f32 %v294, %v291
        %v296 = vmul.f32 %v294, %v293
        %v297 = vadd.f32 %v287, %v295
        %v298 = vadd.f32 %v288, %v296
        %s299 = sld [smem:[#allocation8 + $0x3]]
        %300 = vrot.lane.b32.xlu0 %v271, 125
        %v301 = vpop.permute.xlu0 %300
        %302 = vrot.lane.b32.xlu0 %v272, 125
        %v303 = vpop.permute.xlu0 %302
        %v304 = vstv %s299
        %v305 = vmul.f32 %v304, %v301
        %v306 = vmul.f32 %v304, %v303
        %v307 = vadd.f32 %v297, %v305
        %v308 = vadd.f32 %v298, %v306
        %s309 = sld [smem:[#allocation8 + $0x4]]
        %310 = vrot.lane.b32.xlu0 %v271, 124
        %v311 = vpop.permute.xlu0 %310
        %312 = vrot.lane.b32.xlu0 %v272, 124
        %v313 = vpop.permute.xlu0 %312
        %v314 = vstv %s309
        %v315 = vmul.f32 %v314, %v311
        %v316 = vmul.f32 %v314, %v313
        %v317 = vadd.f32 %v307, %v315
        %v318 = vadd.f32 %v308, %v316
        %s319 = sld [smem:[#allocation8 + $0x5]]
        %320 = vrot.lane.b32.xlu0 %v271, 123
        %v321 = vpop.permute.xlu0 %320
        %322 = vrot.lane.b32.xlu0 %v272, 123
        %v323 = vpop.permute.xlu0 %322
        %v324 = vstv %s319
        %v325 = vmul.f32 %v324, %v321
        %v326 = vmul.f32 %v324, %v323
        %v327 = vadd.f32 %v317, %v325
        %v328 = vadd.f32 %v318, %v326
        %s329 = sld [smem:[#allocation8 + $0x6]]
        %330 = vrot.lane.b32.xlu0 %v271, 122
        %v331 = vpop.permute.xlu0 %330
        %332 = vrot.lane.b32.xlu0 %v272, 122
        %v333 = vpop.permute.xlu0 %332
        %v334 = vstv %s329
        %v335 = vmul.f32 %v334, %v331
        %v336 = vmul.f32 %v334, %v333
        %v337 = vadd.f32 %v327, %v335
        %v338 = vadd.f32 %v328, %v336
        %v339 = vld [vmem:[#allocation2 + $0x1] sm:$0xff]
        %v340 = vld [vmem:[#allocation2 + $0x9] sm:$0xff]
        %s341 = sld [smem:[#allocation8 + $0x7]]
        %v342 = vstv %s341
        %v343 = vmul.f32 %v342, %v339
        %v344 = vmul.f32 %v342, %v340
        %v345 = vadd.f32 %v337, %v343
        %v346 = vadd.f32 %v338, %v344
        %s347 = sld [smem:[#allocation8 + $0x8]]
        %348 = vrot.lane.b32.xlu0 %v339, 127
        %v349 = vpop.permute.xlu0 %348
        %350 = vrot.lane.b32.xlu0 %v340, 127
        %v351 = vpop.permute.xlu0 %350
        %v352 = vstv %s347
        %v353 = vmul.f32 %v352, %v349
        %v354 = vmul.f32 %v352, %v351
        %v355 = vadd.f32 %v345, %v353
        %v356 = vadd.f32 %v346, %v354
        %s357 = sld [smem:[#allocation8 + $0x9]]
        %358 = vrot.lane.b32.xlu0 %v339, 126
        %v359 = vpop.permute.xlu0 %358
        %360 = vrot.lane.b32.xlu0 %v340, 126
        %v361 = vpop.permute.xlu0 %360
        %v362 = vstv %s357
        %v363 = vmul.f32 %v362, %v359
        %v364 = vmul.f32 %v362, %v361
        %v365 = vadd.f32 %v355, %v363
        %v366 = vadd.f32 %v356, %v364
        %s367 = sld [smem:[#allocation8 + $0xa]]
        %368 = vrot.lane.b32.xlu0 %v339, 125
        %v369 = vpop.permute.xlu0 %368
        %370 = vrot.lane.b32.xlu0 %v340, 125
        %v371 = vpop.permute.xlu0 %370
        %v372 = vstv %s367
        %v373 = vmul.f32 %v372, %v369
        %v374 = vmul.f32 %v372, %v371
        %v375 = vadd.f32 %v365, %v373
        %v376 = vadd.f32 %v366, %v374
        %s377 = sld [smem:[#allocation8 + $0xb]]
        %378 = vrot.lane.b32.xlu0 %v339, 124
        %v379 = vpop.permute.xlu0 %378
        %380 = vrot.lane.b32.xlu0 %v340, 124
        %v381 = vpop.permute.xlu0 %380
        %v382 = vstv %s377
        %v383 = vmul.f32 %v382, %v379
        %v384 = vmul.f32 %v382, %v381
        %v385 = vadd.f32 %v375, %v383
        %v386 = vadd.f32 %v376, %v384
        %s387 = sld [smem:[#allocation8 + $0xc]]
        %388 = vrot.lane.b32.xlu0 %v339, 123
        %v389 = vpop.permute.xlu0 %388
        %390 = vrot.lane.b32.xlu0 %v340, 123
        %v391 = vpop.permute.xlu0 %390
        %v392 = vstv %s387
        %v393 = vmul.f32 %v392, %v389
        %v394 = vmul.f32 %v392, %v391
        %v395 = vadd.f32 %v385, %v393
        %v396 = vadd.f32 %v386, %v394
        %s397 = sld [smem:[#allocation8 + $0xd]]
        %398 = vrot.lane.b32.xlu0 %v339, 122
        %v399 = vpop.permute.xlu0 %398
        %400 = vrot.lane.b32.xlu0 %v340, 122
        %v401 = vpop.permute.xlu0 %400
        %v402 = vstv %s397
        %v403 = vmul.f32 %v402, %v399
        %v404 = vmul.f32 %v402, %v401
        %v405 = vadd.f32 %v395, %v403
        %v406 = vadd.f32 %v396, %v404
        %v407 = vld [vmem:[#allocation2 + $0x2] sm:$0xff]
        %v408 = vld [vmem:[#allocation2 + $0xa] sm:$0xff]
        %s409 = sld [smem:[#allocation8 + $0xe]]
        %v410 = vstv %s409
        %v411 = vmul.f32 %v410, %v407
        %v412 = vmul.f32 %v410, %v408
        %v413 = vadd.f32 %v405, %v411
        %v414 = vadd.f32 %v406, %v412
        %s415 = sld [smem:[#allocation8 + $0xf]]
        %416 = vrot.lane.b32.xlu0 %v407, 127
        %v417 = vpop.permute.xlu0 %416
        %418 = vrot.lane.b32.xlu0 %v408, 127
        %v419 = vpop.permute.xlu0 %418
        %v420 = vstv %s415
        %v421 = vmul.f32 %v420, %v417
        %v422 = vmul.f32 %v420, %v419
        %v423 = vadd.f32 %v413, %v421
        %v424 = vadd.f32 %v414, %v422
        %s425 = sld [smem:[#allocation8 + $0x10]]
        %426 = vrot.lane.b32.xlu0 %v407, 126
        %v427 = vpop.permute.xlu0 %426
        %428 = vrot.lane.b32.xlu0 %v408, 126
        %v429 = vpop.permute.xlu0 %428
        %v430 = vstv %s425
        %v431 = vmul.f32 %v430, %v427
        %v432 = vmul.f32 %v430, %v429
        %v433 = vadd.f32 %v423, %v431
        %v434 = vadd.f32 %v424, %v432
        %s435 = sld [smem:[#allocation8 + $0x11]]
        %436 = vrot.lane.b32.xlu0 %v407, 125
        %v437 = vpop.permute.xlu0 %436
        %438 = vrot.lane.b32.xlu0 %v408, 125
        %v439 = vpop.permute.xlu0 %438
        %v440 = vstv %s435
        %v441 = vmul.f32 %v440, %v437
        %v442 = vmul.f32 %v440, %v439
        %v443 = vadd.f32 %v433, %v441
        %v444 = vadd.f32 %v434, %v442
        %s445 = sld [smem:[#allocation8 + $0x12]]
        %446 = vrot.lane.b32.xlu0 %v407, 124
        %v447 = vpop.permute.xlu0 %446
        %448 = vrot.lane.b32.xlu0 %v408, 124
        %v449 = vpop.permute.xlu0 %448
        %v450 = vstv %s445
        %v451 = vmul.f32 %v450, %v447
        %v452 = vmul.f32 %v450, %v449
        %v453 = vadd.f32 %v443, %v451
        %v454 = vadd.f32 %v444, %v452
        %s455 = sld [smem:[#allocation8 + $0x13]]
        %456 = vrot.lane.b32.xlu0 %v407, 123
        %v457 = vpop.permute.xlu0 %456
        %458 = vrot.lane.b32.xlu0 %v408, 123
        %v459 = vpop.permute.xlu0 %458
        %v460 = vstv %s455
        %v461 = vmul.f32 %v460, %v457
        %v462 = vmul.f32 %v460, %v459
        %v463 = vadd.f32 %v453, %v461
        %v464 = vadd.f32 %v454, %v462
        %s465 = sld [smem:[#allocation8 + $0x14]]
        %466 = vrot.lane.b32.xlu0 %v407, 122
        %v467 = vpop.permute.xlu0 %466
        %468 = vrot.lane.b32.xlu0 %v408, 122
        %v469 = vpop.permute.xlu0 %468
        %v470 = vstv %s465
        %v471 = vmul.f32 %v470, %v467
        %v472 = vmul.f32 %v470, %v469
        %v473 = vadd.f32 %v463, %v471
        %v474 = vadd.f32 %v464, %v472
        %v475 = vld [vmem:[#allocation2 + $0x3] sm:$0xff]
        %v476 = vld [vmem:[#allocation2 + $0xb] sm:$0xff]
        %s477 = sld [smem:[#allocation8 + $0x15]]
        %v478 = vstv %s477
        %v479 = vmul.f32 %v478, %v475
        %v480 = vmul.f32 %v478, %v476
        %v481 = vadd.f32 %v473, %v479
        %v482 = vadd.f32 %v474, %v480
        %s483 = sld [smem:[#allocation8 + $0x16]]
        %484 = vrot.lane.b32.xlu0 %v475, 127
        %v485 = vpop.permute.xlu0 %484
        %486 = vrot.lane.b32.xlu0 %v476, 127
        %v487 = vpop.permute.xlu0 %486
        %v488 = vstv %s483
        %v489 = vmul.f32 %v488, %v485
        %v490 = vmul.f32 %v488, %v487
        %v491 = vadd.f32 %v481, %v489
        %v492 = vadd.f32 %v482, %v490
        %s493 = sld [smem:[#allocation8 + $0x17]]
        %494 = vrot.lane.b32.xlu0 %v475, 126
        %v495 = vpop.permute.xlu0 %494
        %496 = vrot.lane.b32.xlu0 %v476, 126
        %v497 = vpop.permute.xlu0 %496
        %v498 = vstv %s493
        %v499 = vmul.f32 %v498, %v495
        %v500 = vmul.f32 %v498, %v497
        %v501 = vadd.f32 %v491, %v499
        %v502 = vadd.f32 %v492, %v500
        %s503 = sld [smem:[#allocation8 + $0x18]]
        %504 = vrot.lane.b32.xlu0 %v475, 125
        %v505 = vpop.permute.xlu0 %504
        %506 = vrot.lane.b32.xlu0 %v476, 125
        %v507 = vpop.permute.xlu0 %506
        %v508 = vstv %s503
        %v509 = vmul.f32 %v508, %v505
        %v510 = vmul.f32 %v508, %v507
        %v511 = vadd.f32 %v501, %v509
        %v512 = vadd.f32 %v502, %v510
        %s513 = sld [smem:[#allocation8 + $0x19]]
        %514 = vrot.lane.b32.xlu0 %v475, 124
        %v515 = vpop.permute.xlu0 %514
        %516 = vrot.lane.b32.xlu0 %v476, 124
        %v517 = vpop.permute.xlu0 %516
        %v518 = vstv %s513
        %v519 = vmul.f32 %v518, %v515
        %v520 = vmul.f32 %v518, %v517
        %v521 = vadd.f32 %v511, %v519
        %v522 = vadd.f32 %v512, %v520
        %s523 = sld [smem:[#allocation8 + $0x1a]]
        %524 = vrot.lane.b32.xlu0 %v475, 123
        %v525 = vpop.permute.xlu0 %524
        %526 = vrot.lane.b32.xlu0 %v476, 123
        %v527 = vpop.permute.xlu0 %526
        %v528 = vstv %s523
        %v529 = vmul.f32 %v528, %v525
        %v530 = vmul.f32 %v528, %v527
        %v531 = vadd.f32 %v521, %v529
        %v532 = vadd.f32 %v522, %v530
        %s533 = sld [smem:[#allocation8 + $0x1b]]
        %534 = vrot.lane.b32.xlu0 %v475, 122
        %v535 = vpop.permute.xlu0 %534
        %536 = vrot.lane.b32.xlu0 %v476, 122
        %v537 = vpop.permute.xlu0 %536
        %v538 = vstv %s533
        %v539 = vmul.f32 %v538, %v535
        %v540 = vmul.f32 %v538, %v537
        %v541 = vadd.f32 %v531, %v539
        %v542 = vadd.f32 %v532, %v540
        %v543 = vld [vmem:[#allocation2 + $0x4] sm:$0xff]
        %v544 = vld [vmem:[#allocation2 + $0xc] sm:$0xff]
        %s545 = sld [smem:[#allocation8 + $0x1c]]
        %v546 = vstv %s545
        %v547 = vmul.f32 %v546, %v543
        %v548 = vmul.f32 %v546, %v544
        %v549 = vadd.f32 %v541, %v547
        %v550 = vadd.f32 %v542, %v548
        %s551 = sld [smem:[#allocation8 + $0x1d]]
        %552 = vrot.lane.b32.xlu0 %v543, 127
        %v553 = vpop.permute.xlu0 %552
        %554 = vrot.lane.b32.xlu0 %v544, 127
        %v555 = vpop.permute.xlu0 %554
        %v556 = vstv %s551
        %v557 = vmul.f32 %v556, %v553
        %v558 = vmul.f32 %v556, %v555
        %v559 = vadd.f32 %v549, %v557
        %v560 = vadd.f32 %v550, %v558
        %s561 = sld [smem:[#allocation8 + $0x1e]]
        %562 = vrot.lane.b32.xlu0 %v543, 126
        %v563 = vpop.permute.xlu0 %562
        %564 = vrot.lane.b32.xlu0 %v544, 126
        %v565 = vpop.permute.xlu0 %564
        %v566 = vstv %s561
        %v567 = vmul.f32 %v566, %v563
        %v568 = vmul.f32 %v566, %v565
        %v569 = vadd.f32 %v559, %v567
        %v570 = vadd.f32 %v560, %v568
        %s571 = sld [smem:[#allocation8 + $0x1f]]
        %572 = vrot.lane.b32.xlu0 %v543, 125
        %v573 = vpop.permute.xlu0 %572
        %574 = vrot.lane.b32.xlu0 %v544, 125
        %v575 = vpop.permute.xlu0 %574
        %v576 = vstv %s571
        %v577 = vmul.f32 %v576, %v573
        %v578 = vmul.f32 %v576, %v575
        %v579 = vadd.f32 %v569, %v577
        %v580 = vadd.f32 %v570, %v578
        %s581 = sld [smem:[#allocation8 + $0x20]]
        %582 = vrot.lane.b32.xlu0 %v543, 124
        %v583 = vpop.permute.xlu0 %582
        %584 = vrot.lane.b32.xlu0 %v544, 124
        %v585 = vpop.permute.xlu0 %584
        %v586 = vstv %s581
        %v587 = vmul.f32 %v586, %v583
        %v588 = vmul.f32 %v586, %v585
        %v589 = vadd.f32 %v579, %v587
        %v590 = vadd.f32 %v580, %v588
        %s591 = sld [smem:[#allocation8 + $0x21]]
        %592 = vrot.lane.b32.xlu0 %v543, 123
        %v593 = vpop.permute.xlu0 %592
        %594 = vrot.lane.b32.xlu0 %v544, 123
        %v595 = vpop.permute.xlu0 %594
        %v596 = vstv %s591
        %v597 = vmul.f32 %v596, %v593
        %v598 = vmul.f32 %v596, %v595
        %v599 = vadd.f32 %v589, %v597
        %v600 = vadd.f32 %v590, %v598
        %s601 = sld [smem:[#allocation8 + $0x22]]
        %602 = vrot.lane.b32.xlu0 %v543, 122
        %v603 = vpop.permute.xlu0 %602
        %604 = vrot.lane.b32.xlu0 %v544, 122
        %v605 = vpop.permute.xlu0 %604
        %v606 = vstv %s601
        %v607 = vmul.f32 %v606, %v603
        %v608 = vmul.f32 %v606, %v605
        %v609 = vadd.f32 %v599, %v607
        %v610 = vadd.f32 %v600, %v608
        %v611 = vld [vmem:[#allocation2 + $0x5] sm:$0xff]
        %v612 = vld [vmem:[#allocation2 + $0xd] sm:$0xff]
        %s613 = sld [smem:[#allocation8 + $0x23]]
        %v614 = vstv %s613
        %v615 = vmul.f32 %v614, %v611
        %v616 = vmul.f32 %v614, %v612
        %v617 = vadd.f32 %v609, %v615
        %v618 = vadd.f32 %v610, %v616
        %s619 = sld [smem:[#allocation8 + $0x24]]
        %620 = vrot.lane.b32.xlu0 %v611, 127
        %v621 = vpop.permute.xlu0 %620
        %622 = vrot.lane.b32.xlu0 %v612, 127
        %v623 = vpop.permute.xlu0 %622
        %v624 = vstv %s619
        %v625 = vmul.f32 %v624, %v621
        %v626 = vmul.f32 %v624, %v623
        %v627 = vadd.f32 %v617, %v625
        %v628 = vadd.f32 %v618, %v626
        %s629 = sld [smem:[#allocation8 + $0x25]]
        %630 = vrot.lane.b32.xlu0 %v611, 126
        %v631 = vpop.permute.xlu0 %630
        %632 = vrot.lane.b32.xlu0 %v612, 126
        %v633 = vpop.permute.xlu0 %632
        %v634 = vstv %s629
        %v635 = vmul.f32 %v634, %v631
        %v636 = vmul.f32 %v634, %v633
        %v637 = vadd.f32 %v627, %v635
        %v638 = vadd.f32 %v628, %v636
        %s639 = sld [smem:[#allocation8 + $0x26]]
        %640 = vrot.lane.b32.xlu0 %v611, 125
        %v641 = vpop.permute.xlu0 %640
        %642 = vrot.lane.b32.xlu0 %v612, 125
        %v643 = vpop.permute.xlu0 %642
        %v644 = vstv %s639
        %v645 = vmul.f32 %v644, %v641
        %v646 = vmul.f32 %v644, %v643
        %v647 = vadd.f32 %v637, %v645
        %v648 = vadd.f32 %v638, %v646
        %s649 = sld [smem:[#allocation8 + $0x27]]
        %650 = vrot.lane.b32.xlu0 %v611, 124
        %v651 = vpop.permute.xlu0 %650
        %652 = vrot.lane.b32.xlu0 %v612, 124
        %v653 = vpop.permute.xlu0 %652
        %v654 = vstv %s649
        %v655 = vmul.f32 %v654, %v651
        %v656 = vmul.f32 %v654, %v653
        %v657 = vadd.f32 %v647, %v655
        %v658 = vadd.f32 %v648, %v656
        %s659 = sld [smem:[#allocation8 + $0x28]]
        %660 = vrot.lane.b32.xlu0 %v611, 123
        %v661 = vpop.permute.xlu0 %660
        %662 = vrot.lane.b32.xlu0 %v612, 123
        %v663 = vpop.permute.xlu0 %662
        %v664 = vstv %s659
        %v665 = vmul.f32 %v664, %v661
        %v666 = vmul.f32 %v664, %v663
        %v667 = vadd.f32 %v657, %v665
        %v668 = vadd.f32 %v658, %v666
        %s669 = sld [smem:[#allocation8 + $0x29]]
        %670 = vrot.lane.b32.xlu0 %v611, 122
        %v671 = vpop.permute.xlu0 %670
        %672 = vrot.lane.b32.xlu0 %v612, 122
        %v673 = vpop.permute.xlu0 %672
        %v674 = vstv %s669
        %v675 = vmul.f32 %v674, %v671
        %v676 = vmul.f32 %v674, %v673
        %v677 = vadd.f32 %v667, %v675
        %v678 = vadd.f32 %v668, %v676
        %v679 = vld [vmem:[#allocation2 + $0x6] sm:$0xff]
        %v680 = vld [vmem:[#allocation2 + $0xe] sm:$0xff]
        %s681 = sld [smem:[#allocation8 + $0x2a]]
        %v682 = vstv %s681
        %v683 = vmul.f32 %v682, %v679
        %v684 = vmul.f32 %v682, %v680
        %v685 = vadd.f32 %v677, %v683
        %v686 = vadd.f32 %v678, %v684
        %s687 = sld [smem:[#allocation8 + $0x2b]]
        %688 = vrot.lane.b32.xlu0 %v679, 127
        %v689 = vpop.permute.xlu0 %688
        %690 = vrot.lane.b32.xlu0 %v680, 127
        %v691 = vpop.permute.xlu0 %690
        %v692 = vstv %s687
        %v693 = vmul.f32 %v692, %v689
        %v694 = vmul.f32 %v692, %v691
        %v695 = vadd.f32 %v685, %v693
        %v696 = vadd.f32 %v686, %v694
        %s697 = sld [smem:[#allocation8 + $0x2c]]
        %698 = vrot.lane.b32.xlu0 %v679, 126
        %v699 = vpop.permute.xlu0 %698
        %700 = vrot.lane.b32.xlu0 %v680, 126
        %v701 = vpop.permute.xlu0 %700
        %v702 = vstv %s697
        %v703 = vmul.f32 %v702, %v699
        %v704 = vmul.f32 %v702, %v701
        %v705 = vadd.f32 %v695, %v703
        %v706 = vadd.f32 %v696, %v704
        %s707 = sld [smem:[#allocation8 + $0x2d]]
        %708 = vrot.lane.b32.xlu0 %v679, 125
        %v709 = vpop.permute.xlu0 %708
        %710 = vrot.lane.b32.xlu0 %v680, 125
        %v711 = vpop.permute.xlu0 %710
        %v712 = vstv %s707
        %v713 = vmul.f32 %v712, %v709
        %v714 = vmul.f32 %v712, %v711
        %v715 = vadd.f32 %v705, %v713
        %v716 = vadd.f32 %v706, %v714
        %s717 = sld [smem:[#allocation8 + $0x2e]]
        %718 = vrot.lane.b32.xlu0 %v679, 124
        %v719 = vpop.permute.xlu0 %718
        %720 = vrot.lane.b32.xlu0 %v680, 124
        %v721 = vpop.permute.xlu0 %720
        %v722 = vstv %s717
        %v723 = vmul.f32 %v722, %v719
        %v724 = vmul.f32 %v722, %v721
        %v725 = vadd.f32 %v715, %v723
        %v726 = vadd.f32 %v716, %v724
        %s727 = sld [smem:[#allocation8 + $0x2f]]
        %728 = vrot.lane.b32.xlu0 %v679, 123
        %v729 = vpop.permute.xlu0 %728
        %730 = vrot.lane.b32.xlu0 %v680, 123
        %v731 = vpop.permute.xlu0 %730
        %v732 = vstv %s727
        %v733 = vmul.f32 %v732, %v729
        %v734 = vmul.f32 %v732, %v731
        %v735 = vadd.f32 %v725, %v733
        %v736 = vadd.f32 %v726, %v734
        %s737 = sld [smem:[#allocation8 + $0x30]]
        %738 = vrot.lane.b32.xlu0 %v679, 122
        %v739 = vpop.permute.xlu0 %738
        %740 = vrot.lane.b32.xlu0 %v680, 122
        %v741 = vpop.permute.xlu0 %740
        %v742 = vstv %s737
        %v743 = vmul.f32 %v742, %v739
        %v744 = vmul.f32 %v742, %v741
        %v745 = vadd.f32 %v735, %v743
        %v746 = vadd.f32 %v736, %v744
        %v747 = vld [vmem:[%s268] sm:$0xff]
        %v748 = vld [vmem:[%s268 + $0x8] sm:$0xff]
        %s749 = sld [smem:[#allocation8 + $0x31]]
        %v750 = vstv %s749
        %v751 = vmul.f32 %v750, %v747
        %v752 = vmul.f32 %v750, %v748
        %v753 = vadd.f32 %v745, %v751
        %v754 = vadd.f32 %v746, %v752
        %s755 = sld [smem:[#allocation8 + $0x32]]
        %756 = vrot.lane.b32.xlu0 %v747, 127
        %v757 = vpop.permute.xlu0 %756
        %758 = vrot.lane.b32.xlu0 %v748, 127
        %v759 = vpop.permute.xlu0 %758
        %v760 = vstv %s755
        %v761 = vmul.f32 %v760, %v757
        %v762 = vmul.f32 %v760, %v759
        %v763 = vadd.f32 %v753, %v761
        %v764 = vadd.f32 %v754, %v762
        %s765 = sld [smem:[#allocation8 + $0x33]]
        %766 = vrot.lane.b32.xlu0 %v747, 126
        %v767 = vpop.permute.xlu0 %766
        %768 = vrot.lane.b32.xlu0 %v748, 126
        %v769 = vpop.permute.xlu0 %768
        %v770 = vstv %s765
        %v771 = vmul.f32 %v770, %v767
        %v772 = vmul.f32 %v770, %v769
        %v773 = vadd.f32 %v763, %v771
        %v774 = vadd.f32 %v764, %v772
        %s775 = sld [smem:[#allocation8 + $0x34]]
        %776 = vrot.lane.b32.xlu0 %v747, 125
        %v777 = vpop.permute.xlu0 %776
        %778 = vrot.lane.b32.xlu0 %v748, 125
        %v779 = vpop.permute.xlu0 %778
        %v780 = vstv %s775
        %v781 = vmul.f32 %v780, %v777
        %v782 = vmul.f32 %v780, %v779
        %v783 = vadd.f32 %v773, %v781
        %v784 = vadd.f32 %v774, %v782
        %s785 = sld [smem:[#allocation8 + $0x35]]
        %786 = vrot.lane.b32.xlu0 %v747, 124
        %v787 = vpop.permute.xlu0 %786
        %788 = vrot.lane.b32.xlu0 %v748, 124
        %v789 = vpop.permute.xlu0 %788
        %v790 = vstv %s785
        %v791 = vmul.f32 %v790, %v787
        %v792 = vmul.f32 %v790, %v789
        %v793 = vadd.f32 %v783, %v791
        %v794 = vadd.f32 %v784, %v792
        %s795 = sld [smem:[#allocation8 + $0x36]]
        %796 = vrot.lane.b32.xlu0 %v747, 123
        %v797 = vpop.permute.xlu0 %796
        %798 = vrot.lane.b32.xlu0 %v748, 123
        %v799 = vpop.permute.xlu0 %798
        %v800 = vstv %s795
        %v801 = vmul.f32 %v800, %v797
        %v802 = vmul.f32 %v800, %v799
        %v803 = vadd.f32 %v793, %v801
        %v804 = vadd.f32 %v794, %v802
        %s805 = sld [smem:[#allocation8 + $0x37]]
        %806 = vrot.lane.b32.xlu0 %v747, 122
        %v807 = vpop.permute.xlu0 %806
        %808 = vrot.lane.b32.xlu0 %v748, 122
        %v809 = vpop.permute.xlu0 %808
        %v810 = vstv %s805
        %v811 = vmul.f32 %v810, %v807
        %v812 = vmul.f32 %v810, %v809
        %v813 = vadd.f32 %v803, %v811
        %v814 = vadd.f32 %v804, %v812
        %v815 = vld [vmem:[%s268 + $0x1] sm:$0xff]
        %v816 = vld [vmem:[%s268 + $0x9] sm:$0xff]
        %s817 = sld [smem:[#allocation8 + $0x38]]
        %v818 = vstv %s817
        %v819 = vmul.f32 %v818, %v815
        %v820 = vmul.f32 %v818, %v816
        %v821 = vadd.f32 %v813, %v819
        %v822 = vadd.f32 %v814, %v820
        %s823 = sld [smem:[#allocation8 + $0x39]]
        %824 = vrot.lane.b32.xlu0 %v815, 127
        %v825 = vpop.permute.xlu0 %824
        %826 = vrot.lane.b32.xlu0 %v816, 127
        %v827 = vpop.permute.xlu0 %826
        %v828 = vstv %s823
        %v829 = vmul.f32 %v828, %v825
        %v830 = vmul.f32 %v828, %v827
        %v831 = vadd.f32 %v821, %v829
        %v832 = vadd.f32 %v822, %v830
        %s833 = sld [smem:[#allocation8 + $0x3a]]
        %834 = vrot.lane.b32.xlu0 %v815, 126
        %v835 = vpop.permute.xlu0 %834
        %836 = vrot.lane.b32.xlu0 %v816, 126
        %v837 = vpop.permute.xlu0 %836
        %v838 = vstv %s833
        %v839 = vmul.f32 %v838, %v835
        %v840 = vmul.f32 %v838, %v837
        %v841 = vadd.f32 %v831, %v839
        %v842 = vadd.f32 %v832, %v840
        %s843 = sld [smem:[#allocation8 + $0x3b]]
        %844 = vrot.lane.b32.xlu0 %v815, 125
        %v845 = vpop.permute.xlu0 %844
        %846 = vrot.lane.b32.xlu0 %v816, 125
        %v847 = vpop.permute.xlu0 %846
        %v848 = vstv %s843
        %v849 = vmul.f32 %v848, %v845
        %v850 = vmul.f32 %v848, %v847
        %v851 = vadd.f32 %v841, %v849
        %v852 = vadd.f32 %v842, %v850
        %s853 = sld [smem:[#allocation8 + $0x3c]]
        %854 = vrot.lane.b32.xlu0 %v815, 124
        %v855 = vpop.permute.xlu0 %854
        %856 = vrot.lane.b32.xlu0 %v816, 124
        %v857 = vpop.permute.xlu0 %856
        %v858 = vstv %s853
        %v859 = vmul.f32 %v858, %v855
        %v860 = vmul.f32 %v858, %v857
        %v861 = vadd.f32 %v851, %v859
        %v862 = vadd.f32 %v852, %v860
        %s863 = sld [smem:[#allocation8 + $0x3d]]
        %864 = vrot.lane.b32.xlu0 %v815, 123
        %v865 = vpop.permute.xlu0 %864
        %866 = vrot.lane.b32.xlu0 %v816, 123
        %v867 = vpop.permute.xlu0 %866
        %v868 = vstv %s863
        %v869 = vmul.f32 %v868, %v865
        %v870 = vmul.f32 %v868, %v867
        %v871 = vadd.f32 %v861, %v869
        %v872 = vadd.f32 %v862, %v870
        %s873 = sld [smem:[#allocation8 + $0x3e]]
        %874 = vrot.lane.b32.xlu0 %v815, 122
        %v875 = vpop.permute.xlu0 %874
        %876 = vrot.lane.b32.xlu0 %v816, 122
        %v877 = vpop.permute.xlu0 %876
        %v878 = vstv %s873
        %v879 = vmul.f32 %v878, %v875
        %v880 = vmul.f32 %v878, %v877
        %v881 = vadd.f32 %v871, %v879
        %v882 = vadd.f32 %v872, %v880
        %v883 = vld [vmem:[%s268 + $0x2] sm:$0xff]
        %v884 = vld [vmem:[%s268 + $0xa] sm:$0xff]
        %s885 = sld [smem:[#allocation8 + $0x3f]]
        %v886 = vstv %s885
        %v887 = vmul.f32 %v886, %v883
        %v888 = vmul.f32 %v886, %v884
        %v889 = vadd.f32 %v881, %v887
        %v890 = vadd.f32 %v882, %v888
        %s891 = sld [smem:[#allocation8 + $0x40]]
        %892 = vrot.lane.b32.xlu0 %v883, 127
        %v893 = vpop.permute.xlu0 %892
        %894 = vrot.lane.b32.xlu0 %v884, 127
        %v895 = vpop.permute.xlu0 %894
        %v896 = vstv %s891
        %v897 = vmul.f32 %v896, %v893
        %v898 = vmul.f32 %v896, %v895
        %v899 = vadd.f32 %v889, %v897
        %v900 = vadd.f32 %v890, %v898
        %s901 = sld [smem:[#allocation8 + $0x41]]
        %902 = vrot.lane.b32.xlu0 %v883, 126
        %v903 = vpop.permute.xlu0 %902
        %904 = vrot.lane.b32.xlu0 %v884, 126
        %v905 = vpop.permute.xlu0 %904
        %v906 = vstv %s901
        %v907 = vmul.f32 %v906, %v903
        %v908 = vmul.f32 %v906, %v905
        %v909 = vadd.f32 %v899, %v907
        %v910 = vadd.f32 %v900, %v908
        %s911 = sld [smem:[#allocation8 + $0x42]]
        %912 = vrot.lane.b32.xlu0 %v883, 125
        %v913 = vpop.permute.xlu0 %912
        %914 = vrot.lane.b32.xlu0 %v884, 125
        %v915 = vpop.permute.xlu0 %914
        %v916 = vstv %s911
        %v917 = vmul.f32 %v916, %v913
        %v918 = vmul.f32 %v916, %v915
        %v919 = vadd.f32 %v909, %v917
        %v920 = vadd.f32 %v910, %v918
        %s921 = sld [smem:[#allocation8 + $0x43]]
        %922 = vrot.lane.b32.xlu0 %v883, 124
        %v923 = vpop.permute.xlu0 %922
        %924 = vrot.lane.b32.xlu0 %v884, 124
        %v925 = vpop.permute.xlu0 %924
        %v926 = vstv %s921
        %v927 = vmul.f32 %v926, %v923
        %v928 = vmul.f32 %v926, %v925
        %v929 = vadd.f32 %v919, %v927
        %v930 = vadd.f32 %v920, %v928
        %s931 = sld [smem:[#allocation8 + $0x44]]
        %932 = vrot.lane.b32.xlu0 %v883, 123
        %v933 = vpop.permute.xlu0 %932
        %934 = vrot.lane.b32.xlu0 %v884, 123
        %v935 = vpop.permute.xlu0 %934
        %v936 = vstv %s931
        %v937 = vmul.f32 %v936, %v933
        %v938 = vmul.f32 %v936, %v935
        %v939 = vadd.f32 %v929, %v937
        %v940 = vadd.f32 %v930, %v938
        %s941 = sld [smem:[#allocation8 + $0x45]]
        %942 = vrot.lane.b32.xlu0 %v883, 122
        %v943 = vpop.permute.xlu0 %942
        %944 = vrot.lane.b32.xlu0 %v884, 122
        %v945 = vpop.permute.xlu0 %944
        %v946 = vstv %s941
        %v947 = vmul.f32 %v946, %v943
        %v948 = vmul.f32 %v946, %v945
        %v949 = vadd.f32 %v939, %v947
        %v950 = vadd.f32 %v940, %v948
        %v951 = vld [vmem:[%s268 + $0x3] sm:$0xff]
        %v952 = vld [vmem:[%s268 + $0xb] sm:$0xff]
        %s953 = sld [smem:[#allocation8 + $0x46]]
        %v954 = vstv %s953
        %v955 = vmul.f32 %v954, %v951
        %v956 = vmul.f32 %v954, %v952
        %v957 = vadd.f32 %v949, %v955
        %v958 = vadd.f32 %v950, %v956
        %s959 = sld [smem:[#allocation8 + $0x47]]
        %960 = vrot.lane.b32.xlu0 %v951, 127
        %v961 = vpop.permute.xlu0 %960
        %962 = vrot.lane.b32.xlu0 %v952, 127
        %v963 = vpop.permute.xlu0 %962
        %v964 = vstv %s959
        %v965 = vmul.f32 %v964, %v961
        %v966 = vmul.f32 %v964, %v963
        %v967 = vadd.f32 %v957, %v965
        %v968 = vadd.f32 %v958, %v966
        %s969 = sld [smem:[#allocation8 + $0x48]]
        %970 = vrot.lane.b32.xlu0 %v951, 126
        %v971 = vpop.permute.xlu0 %970
        %972 = vrot.lane.b32.xlu0 %v952, 126
        %v973 = vpop.permute.xlu0 %972
        %v974 = vstv %s969
        %v975 = vmul.f32 %v974, %v971
        %v976 = vmul.f32 %v974, %v973
        %v977 = vadd.f32 %v967, %v975
        %v978 = vadd.f32 %v968, %v976
        %s979 = sld [smem:[#allocation8 + $0x49]]
        %980 = vrot.lane.b32.xlu0 %v951, 125
        %v981 = vpop.permute.xlu0 %980
        %982 = vrot.lane.b32.xlu0 %v952, 125
        %v983 = vpop.permute.xlu0 %982
        %v984 = vstv %s979
        %v985 = vmul.f32 %v984, %v981
        %v986 = vmul.f32 %v984, %v983
        %v987 = vadd.f32 %v977, %v985
        %v988 = vadd.f32 %v978, %v986
        %s989 = sld [smem:[#allocation8 + $0x4a]]
        %990 = vrot.lane.b32.xlu0 %v951, 124
        %v991 = vpop.permute.xlu0 %990
        %992 = vrot.lane.b32.xlu0 %v952, 124
        %v993 = vpop.permute.xlu0 %992
        %v994 = vstv %s989
        %v995 = vmul.f32 %v994, %v991
        %v996 = vmul.f32 %v994, %v993
        %v997 = vadd.f32 %v987, %v995
        %v998 = vadd.f32 %v988, %v996
        %s999 = sld [smem:[#allocation8 + $0x4b]]
        %1000 = vrot.lane.b32.xlu0 %v951, 123
        %v1001 = vpop.permute.xlu0 %1000
        %1002 = vrot.lane.b32.xlu0 %v952, 123
        %v1003 = vpop.permute.xlu0 %1002
        %v1004 = vstv %s999
        %v1005 = vmul.f32 %v1004, %v1001
        %v1006 = vmul.f32 %v1004, %v1003
        %v1007 = vadd.f32 %v997, %v1005
        %v1008 = vadd.f32 %v998, %v1006
        %s1009 = sld [smem:[#allocation8 + $0x4c]]
        %1010 = vrot.lane.b32.xlu0 %v951, 122
        %v1011 = vpop.permute.xlu0 %1010
        %1012 = vrot.lane.b32.xlu0 %v952, 122
        %v1013 = vpop.permute.xlu0 %1012
        %v1014 = vstv %s1009
        %v1015 = vmul.f32 %v1014, %v1011
        %v1016 = vmul.f32 %v1014, %v1013
        %v1017 = vadd.f32 %v1007, %v1015
        %v1018 = vadd.f32 %v1008, %v1016
        %v1019 = vld [vmem:[%s268 + $0x4] sm:$0xff]
        %v1020 = vld [vmem:[%s268 + $0xc] sm:$0xff]
        %s1021 = sld [smem:[#allocation8 + $0x4d]]
        %v1022 = vstv %s1021
        %v1023 = vmul.f32 %v1022, %v1019
        %v1024 = vmul.f32 %v1022, %v1020
        %v1025 = vadd.f32 %v1017, %v1023
        %v1026 = vadd.f32 %v1018, %v1024
        %s1027 = sld [smem:[#allocation8 + $0x4e]]
        %1028 = vrot.lane.b32.xlu0 %v1019, 127
        %v1029 = vpop.permute.xlu0 %1028
        %1030 = vrot.lane.b32.xlu0 %v1020, 127
        %v1031 = vpop.permute.xlu0 %1030
        %v1032 = vstv %s1027
        %v1033 = vmul.f32 %v1032, %v1029
        %v1034 = vmul.f32 %v1032, %v1031
        %v1035 = vadd.f32 %v1025, %v1033
        %v1036 = vadd.f32 %v1026, %v1034
        %s1037 = sld [smem:[#allocation8 + $0x4f]]
        %1038 = vrot.lane.b32.xlu0 %v1019, 126
        %v1039 = vpop.permute.xlu0 %1038
        %1040 = vrot.lane.b32.xlu0 %v1020, 126
        %v1041 = vpop.permute.xlu0 %1040
        %v1042 = vstv %s1037
        %v1043 = vmul.f32 %v1042, %v1039
        %v1044 = vmul.f32 %v1042, %v1041
        %v1045 = vadd.f32 %v1035, %v1043
        %v1046 = vadd.f32 %v1036, %v1044
        %s1047 = sld [smem:[#allocation8 + $0x50]]
        %1048 = vrot.lane.b32.xlu0 %v1019, 125
        %v1049 = vpop.permute.xlu0 %1048
        %1050 = vrot.lane.b32.xlu0 %v1020, 125
        %v1051 = vpop.permute.xlu0 %1050
        %v1052 = vstv %s1047
        %v1053 = vmul.f32 %v1052, %v1049
        %v1054 = vmul.f32 %v1052, %v1051
        %v1055 = vadd.f32 %v1045, %v1053
        %v1056 = vadd.f32 %v1046, %v1054
        %s1057 = sld [smem:[#allocation8 + $0x51]]
        %1058 = vrot.lane.b32.xlu0 %v1019, 124
        %v1059 = vpop.permute.xlu0 %1058
        %1060 = vrot.lane.b32.xlu0 %v1020, 124
        %v1061 = vpop.permute.xlu0 %1060
        %v1062 = vstv %s1057
        %v1063 = vmul.f32 %v1062, %v1059
        %v1064 = vmul.f32 %v1062, %v1061
        %v1065 = vadd.f32 %v1055, %v1063
        %v1066 = vadd.f32 %v1056, %v1064
        %s1067 = sld [smem:[#allocation8 + $0x52]]
        %1068 = vrot.lane.b32.xlu0 %v1019, 123
        %v1069 = vpop.permute.xlu0 %1068
        %1070 = vrot.lane.b32.xlu0 %v1020, 123
        %v1071 = vpop.permute.xlu0 %1070
        %v1072 = vstv %s1067
        %v1073 = vmul.f32 %v1072, %v1069
        %v1074 = vmul.f32 %v1072, %v1071
        %v1075 = vadd.f32 %v1065, %v1073
        %v1076 = vadd.f32 %v1066, %v1074
        %s1077 = sld [smem:[#allocation8 + $0x53]]
        %1078 = vrot.lane.b32.xlu0 %v1019, 122
        %v1079 = vpop.permute.xlu0 %1078
        %1080 = vrot.lane.b32.xlu0 %v1020, 122
        %v1081 = vpop.permute.xlu0 %1080
        %v1082 = vstv %s1077
        %v1083 = vmul.f32 %v1082, %v1079
        %v1084 = vmul.f32 %v1082, %v1081
        %v1085 = vadd.f32 %v1075, %v1083
        %v1086 = vadd.f32 %v1076, %v1084
        %v1087 = vld [vmem:[%s268 + $0x5] sm:$0xff]
        %v1088 = vld [vmem:[%s268 + $0xd] sm:$0xff]
        %s1089 = sld [smem:[#allocation8 + $0x54]]
        %v1090 = vstv %s1089
        %v1091 = vmul.f32 %v1090, %v1087
        %v1092 = vmul.f32 %v1090, %v1088
        %v1093 = vadd.f32 %v1085, %v1091
        %v1094 = vadd.f32 %v1086, %v1092
        %s1095 = sld [smem:[#allocation8 + $0x55]]
        %1096 = vrot.lane.b32.xlu0 %v1087, 127
        %v1097 = vpop.permute.xlu0 %1096
        %1098 = vrot.lane.b32.xlu0 %v1088, 127
        %v1099 = vpop.permute.xlu0 %1098
        %v1100 = vstv %s1095
        %v1101 = vmul.f32 %v1100, %v1097
        %v1102 = vmul.f32 %v1100, %v1099
        %v1103 = vadd.f32 %v1093, %v1101
        %v1104 = vadd.f32 %v1094, %v1102
        %s1105 = sld [smem:[#allocation8 + $0x56]]
        %1106 = vrot.lane.b32.xlu0 %v1087, 126
        %v1107 = vpop.permute.xlu0 %1106
        %1108 = vrot.lane.b32.xlu0 %v1088, 126
        %v1109 = vpop.permute.xlu0 %1108
        %v1110 = vstv %s1105
        %v1111 = vmul.f32 %v1110, %v1107
        %v1112 = vmul.f32 %v1110, %v1109
        %v1113 = vadd.f32 %v1103, %v1111
        %v1114 = vadd.f32 %v1104, %v1112
        %s1115 = sld [smem:[#allocation8 + $0x57]]
        %1116 = vrot.lane.b32.xlu0 %v1087, 125
        %v1117 = vpop.permute.xlu0 %1116
        %1118 = vrot.lane.b32.xlu0 %v1088, 125
        %v1119 = vpop.permute.xlu0 %1118
        %v1120 = vstv %s1115
        %v1121 = vmul.f32 %v1120, %v1117
        %v1122 = vmul.f32 %v1120, %v1119
        %v1123 = vadd.f32 %v1113, %v1121
        %v1124 = vadd.f32 %v1114, %v1122
        %s1125 = sld [smem:[#allocation8 + $0x58]]
        %1126 = vrot.lane.b32.xlu0 %v1087, 124
        %v1127 = vpop.permute.xlu0 %1126
        %1128 = vrot.lane.b32.xlu0 %v1088, 124
        %v1129 = vpop.permute.xlu0 %1128
        %v1130 = vstv %s1125
        %v1131 = vmul.f32 %v1130, %v1127
        %v1132 = vmul.f32 %v1130, %v1129
        %v1133 = vadd.f32 %v1123, %v1131
        %v1134 = vadd.f32 %v1124, %v1132
        %s1135 = sld [smem:[#allocation8 + $0x59]]
        %1136 = vrot.lane.b32.xlu0 %v1087, 123
        %v1137 = vpop.permute.xlu0 %1136
        %1138 = vrot.lane.b32.xlu0 %v1088, 123
        %v1139 = vpop.permute.xlu0 %1138
        %v1140 = vstv %s1135
        %v1141 = vmul.f32 %v1140, %v1137
        %v1142 = vmul.f32 %v1140, %v1139
        %v1143 = vadd.f32 %v1133, %v1141
        %v1144 = vadd.f32 %v1134, %v1142
        %s1145 = sld [smem:[#allocation8 + $0x5a]]
        %1146 = vrot.lane.b32.xlu0 %v1087, 122
        %v1147 = vpop.permute.xlu0 %1146
        %1148 = vrot.lane.b32.xlu0 %v1088, 122
        %v1149 = vpop.permute.xlu0 %1148
        %v1150 = vstv %s1145
        %v1151 = vmul.f32 %v1150, %v1147
        %v1152 = vmul.f32 %v1150, %v1149
        %v1153 = vadd.f32 %v1143, %v1151
        %v1154 = vadd.f32 %v1144, %v1152
        %v1155 = vld [vmem:[%s268 + $0x6] sm:$0xff]
        %v1156 = vld [vmem:[%s268 + $0xe] sm:$0xff]
        %s1157 = sld [smem:[#allocation8 + $0x5b]]
        %v1158 = vstv %s1157
        %v1159 = vmul.f32 %v1158, %v1155
        %v1160 = vmul.f32 %v1158, %v1156
        %v1161 = vadd.f32 %v1153, %v1159
        %v1162 = vadd.f32 %v1154, %v1160
        %s1163 = sld [smem:[#allocation8 + $0x5c]]
        %1164 = vrot.lane.b32.xlu0 %v1155, 127
        %v1165 = vpop.permute.xlu0 %1164
        %1166 = vrot.lane.b32.xlu0 %v1156, 127
        %v1167 = vpop.permute.xlu0 %1166
        %v1168 = vstv %s1163
        %v1169 = vmul.f32 %v1168, %v1165
        %v1170 = vmul.f32 %v1168, %v1167
        %v1171 = vadd.f32 %v1161, %v1169
        %v1172 = vadd.f32 %v1162, %v1170
        %s1173 = sld [smem:[#allocation8 + $0x5d]]
        %1174 = vrot.lane.b32.xlu0 %v1155, 126
        %v1175 = vpop.permute.xlu0 %1174
        %1176 = vrot.lane.b32.xlu0 %v1156, 126
        %v1177 = vpop.permute.xlu0 %1176
        %v1178 = vstv %s1173
        %v1179 = vmul.f32 %v1178, %v1175
        %v1180 = vmul.f32 %v1178, %v1177
        %v1181 = vadd.f32 %v1171, %v1179
        %v1182 = vadd.f32 %v1172, %v1180
        %s1183 = sld [smem:[#allocation8 + $0x5e]]
        %1184 = vrot.lane.b32.xlu0 %v1155, 125
        %v1185 = vpop.permute.xlu0 %1184
        %1186 = vrot.lane.b32.xlu0 %v1156, 125
        %v1187 = vpop.permute.xlu0 %1186
        %v1188 = vstv %s1183
        %v1189 = vmul.f32 %v1188, %v1185
        %v1190 = vmul.f32 %v1188, %v1187
        %v1191 = vadd.f32 %v1181, %v1189
        %v1192 = vadd.f32 %v1182, %v1190
        %s1193 = sld [smem:[#allocation8 + $0x5f]]
        %1194 = vrot.lane.b32.xlu0 %v1155, 124
        %v1195 = vpop.permute.xlu0 %1194
        %1196 = vrot.lane.b32.xlu0 %v1156, 124
        %v1197 = vpop.permute.xlu0 %1196
        %v1198 = vstv %s1193
        %v1199 = vmul.f32 %v1198, %v1195
        %v1200 = vmul.f32 %v1198, %v1197
        %v1201 = vadd.f32 %v1191, %v1199
        %v1202 = vadd.f32 %v1192, %v1200
        %s1203 = sld [smem:[#allocation8 + $0x60]]
        %1204 = vrot.lane.b32.xlu0 %v1155, 123
        %v1205 = vpop.permute.xlu0 %1204
        %1206 = vrot.lane.b32.xlu0 %v1156, 123
        %v1207 = vpop.permute.xlu0 %1206
        %v1208 = vstv %s1203
        %v1209 = vmul.f32 %v1208, %v1205
        %v1210 = vmul.f32 %v1208, %v1207
        %v1211 = vadd.f32 %v1201, %v1209
        %v1212 = vadd.f32 %v1202, %v1210
        %s1213 = sld [smem:[#allocation8 + $0x61]]
        %1214 = vrot.lane.b32.xlu0 %v1155, 122
        %v1215 = vpop.permute.xlu0 %1214
        %1216 = vrot.lane.b32.xlu0 %v1156, 122
        %v1217 = vpop.permute.xlu0 %1216
        %v1218 = vstv %s1213
        %v1219 = vmul.f32 %v1218, %v1215
        %v1220 = vmul.f32 %v1218, %v1217
        %v1221 = vadd.f32 %v1211, %v1219
        %v1222 = vadd.f32 %v1212, %v1220
        %s1223 = sld [smem:[#allocation3]]
        %v1224 = vstv %s1223
        %v1225 = vadd.f32 %v1221, %v1224
        %v1226 = vadd.f32 %v1222, %v1224
        %v1227 = vsub.f32 0.0, %v1225
        %v1228 = vsub.f32 0.0, %v1226
        %v1229 = vmul.f32 %v1227, 1.442695
        %v1230 = vpow.pop %v1229
        %v1231 = vmul.f32 %v1228, 1.442695
        %v1232 = vpow.pop %v1231
        %v1233 = vadd.f32 %v1230, 1.0
        %v1234 = vadd.f32 %v1232, 1.0
        %v1235 = vrcp.pop %v1233
        %v1236 = vrcp.pop %v1234
        %v1237 = vmul.f32 %v204, %v1235
        %v1238 = vmul.f32 %v205, %v1236
        %v1239 = vmul.f32 %v206, %v1235
        %v1240 = vmul.f32 %v207, %v1236
        %v1241 = vmul.f32 %v208, %v1235
        %v1242 = vmul.f32 %v209, %v1236
        %v1243 = vmul.f32 %v210, %v1235
        %v1244 = vmul.f32 %v211, %v1236
        %1245 = vst.msk [vmem:[%s203] sm:$0xff] %vm212, %v1237
        %1246 = vst.msk [vmem:[%s203 + $0x8] sm:$0xff] %vm212, %v1238
        %1247 = vst.msk [vmem:[%s203 + $0x10] sm:$0xff] %vm212, %v1239
        %1248 = vst.msk [vmem:[%s203 + $0x18] sm:$0xff] %vm212, %v1240
        %1249 = vst.msk [vmem:[%s203 + $0x20] sm:$0xff] %vm212, %v1241
        %1250 = vst.msk [vmem:[%s203 + $0x28] sm:$0xff] %vm212, %v1242
        %1251 = vst.msk [vmem:[%s203 + $0x30] sm:$0xff] %vm212, %v1243
        %1252 = vst.msk [vmem:[%s203 + $0x38] sm:$0xff] %vm212, %v1244
        %s1253 = sand.u32 %s98, 1
        %s1254 = scalar_lea.sflag [#allocation6], %s1253
        %s1255 = sand.u32 %s98, 1
        %s1256 = smul.addr %s1255, 64
        %s1257 = scalar_lea.vmem [#allocation9], %s1256
        // Predicated region
        $region41: #{spatial_gate_forward.1} parent=31 // pred_check
          %p1258 = pneg %p108
        $region42: #{spatial_gate_forward.1} parent=31 // pred_check_branch
          %1260 = sbr.rel (%p1258) target = $region44
        $region43: #{spatial_gate_forward.1} parent=31 // pred_region
          %s1262 = ssub.s32 1024, 1024
          %1263 = vsyncadd %s1254, %s1262
          %s1264 = smul.addr %s22, 8
          %s1265 = smul.addr %s1264, 128
          %s1266 = scalar_lea.hbm %s3, %s1265
          %s1267 = sshll.u32 %s1257, 4
          %s1268 = int_to_ptr.vmem [resolvable:$true] %s1267
          %1273 = dma.vmem_to_hbm [thread:$0]  %s1268, 1024, %s1266, %s1254, 128, 128, 8
        $region44: #{spatial_gate_forward.1} parent=31 // pred_fallthru
          _
      $region32: #{spatial_gate_forward.1} parent=5 // pred_fallthru
        _
      %p1274 = scmp.le.s32.totalorder 2, %s17
      // Predicated region
      $region45: #{spatial_gate_forward.1} parent=5 // pred_check
        %p1275 = pneg %p1274
      $region46: #{spatial_gate_forward.1} parent=5 // pred_check_branch
        %1277 = sbr.rel (%p1275) target = $region48
      $region47: #{spatial_gate_forward.1} parent=5 // pred_region
        %s1278 = ssub.s32 %s17, 2
        // Predicated region
        $region49: #{spatial_gate_forward.1} parent=47 // pred_check
          %p1279 = pneg %p114
        $region50: #{spatial_gate_forward.1} parent=47 // pred_check_branch
          %1281 = sbr.rel (%p1279) target = $region52
        $region51: #{spatial_gate_forward.1} parent=47 // pred_region
          %s1282 = sand.u32 %s99, 1
          %s1283 = scalar_lea.sflag [#allocation6], %s1282
          %s1284 = sand.u32 %s99, 1
          %s1285 = smul.addr %s1284, 64
          %s1286 = scalar_lea.vmem [#allocation9], %s1285
          %1287 = dma.done %s1283, 1024
        $region52: #{spatial_gate_forward.1} parent=47 // pred_fallthru
          _
      $region48: #{spatial_gate_forward.1} parent=5 // pred_fallthru
        _
    $region6: #{spatial_gate_forward.1} parent=1 // loop_footer
      %s21 = sadd.s32 1, %s17
    $region7: #{spatial_gate_forward.1} parent=1 // loop_footer_branch
      %16 = sbr.rel target = $region3
    $region8: #{spatial_gate_forward.1} parent=1 // loop_exit
      _
    %1288 = vsyncpa [#allocation5], 1
    %s1289 = scalar_lea.sflag [#allocation5], 1
    %1290 = vsyncpa %s1289, 1
    %1291 = vsyncpa [#allocation6], 1
    %s1292 = scalar_lea.sflag [#allocation6], 1
    %1293 = vsyncpa %s1292, 1
    %1294 = vsyncpa [#allocation7], 1
    %s1295 = scalar_lea.sflag [#allocation7], 1
    %1296 = vsyncpa %s1295, 1

</llo_original>
